<compile_context>
chip_gen: v6e
topology: v6e:2x2x1
jax: 0.10.0
libtpu: 0.0.40
codegen_flags: <defaults>
</compile_context>

<pallas_src>
from functools import partial

import numpy as np
import jax
import jax.numpy as jnp
from jax.experimental import pallas as pl
from jax.experimental.pallas import tpu as pltpu

GROWTH = 32
BN_SIZE = 4
BOTTLENECK = BN_SIZE * GROWTH          # 128
BLOCK_CONFIG = (6, 12, 24, 16)
NUM_INIT_FEATURES = 64
NUM_CLASSES = 3                        # COVID classifier head (nn.Linear(1024, 3))
BN_EPS = 1e-5

_VMEM_LIMIT = 32 * 1024 * 1024


def _choose_tile(dim, candidates):
    for c in candidates:
        if c <= dim and dim % c == 0:
            return c
    return dim  # single full-extent block (always a legal block shape)


def _conv_out(size, k, s, p):
    return (size + 2 * p - k) // s + 1


# ------------------------------------------------------------------
# Pallas kernels
# ------------------------------------------------------------------

def _mm_epi_kernel(a_ref, b_ref, s_ref, t_ref, o_ref):
    """Single-K-block matmul with fused BN+ReLU epilogue (no accumulator scratch)."""
    acc = jnp.dot(a_ref[...], b_ref[...], preferred_element_type=jnp.float32)
    o_ref[...] = jnp.maximum(acc * s_ref[...] + t_ref[...], 0.0).astype(o_ref.dtype)


def matmul_bn_relu(a, b, s, t):
    """a:(M,K) @ b:(K,N) -> relu(bn(.)) in bf16.  K is always a single block."""
    M, K = a.shape
    _, N = b.shape
    tm = _choose_tile(M, (512, 256, 128, 64, 32, 16, 8))
    tn = _choose_tile(N, (512, 256, 128)) if N % 128 == 0 else N
    return pl.pallas_call(
        _mm_epi_kernel,
        out_shape=jax.ShapeDtypeStruct((M, N), jnp.bfloat16),
        grid=(M // tm, N // tn),
        in_specs=[pl.BlockSpec((tm, K), lambda i, j: (i, 0)),
                  pl.BlockSpec((K, tn), lambda i, j: (0, j)),
                  pl.BlockSpec((1, tn), lambda i, j: (0, j)),
                  pl.BlockSpec((1, tn), lambda i, j: (0, j))],
        out_specs=pl.BlockSpec((tm, tn), lambda i, j: (i, j)),
        compiler_params=pltpu.CompilerParams(
            dimension_semantics=("parallel", "parallel"),
            vmem_limit_bytes=_VMEM_LIMIT),
    )(a, b, s, t)


def _dense_layer_kernel(x_ref, ps_ref, pt_ref, w1_ref, es_ref, et_ref, w2_ref,
                        o_ref, y1p_ref, *, H, W):
    """One DenseNet layer for one image, fully fused:
       y1 = relu(bn2(relu(bn1(x)) @ w1));  out = conv3x3(y1, w2) (zero padded)."""
    HW = H * W
    x = x_ref[0]                                              # (HW, CK) bf16
    a = jnp.maximum(x.astype(jnp.float32) * ps_ref[...] + pt_ref[...], 0.0)
    y1 = jnp.dot(a.astype(jnp.bfloat16), w1_ref[...],
                 preferred_element_type=jnp.float32)          # (HW, 128) on MXU
    y1 = jnp.maximum(y1 * es_ref[...] + et_ref[...], 0.0).astype(jnp.bfloat16)

    # Zero-padded flat spatial scratch: rows [0,2W) and [2W+HW, 4W+HW) are the halo.
    zeros_halo = jnp.zeros((2 * W, BOTTLENECK), jnp.bfloat16)
    y1p_ref[pl.ds(0, 2 * W), :] = zeros_halo
    y1p_ref[pl.ds(2 * W + HW, 2 * W), :] = zeros_halo
    y1p_ref[pl.ds(2 * W, HW), :] = y1

    # 3x3 conv = 9 shifted (HW,128)@(128,32) matmuls; W-wrap rows are masked to zero.
    col = jax.lax.broadcasted_iota(jnp.int32, (HW, 1), 0) % W
    acc = jnp.zeros((HW, GROWTH), jnp.float32)
    tap = 0
    for di in (-1, 0, 1):
        for dj in (-1, 0, 1):
            src = y1p_ref[pl.ds((2 + di) * W + dj, HW), :]
            if dj == -1:
                src = jnp.where(col > 0, src, jnp.zeros_like(src))
            elif dj == 1:
                src = jnp.where(col < W - 1, src, jnp.zeros_like(src))
            acc = acc + jnp.dot(src, w2_ref[tap], preferred_element_type=jnp.float32)
            tap += 1
    o_ref[0] = acc.astype(o_ref.dtype)


def dense_layer(buf, ps, pt, w1, es, et, w2, *, h, w):
    n, hw, _ = buf.shape
    ck = ps.shape[1]                           # bucketed (<= cf) channel prefix width
    return pl.pallas_call(
        partial(_dense_layer_kernel, H=h, W=w),
        out_shape=jax.ShapeDtypeStruct((n, hw, GROWTH), jnp.bfloat16),
        grid=(n,),
        in_specs=[
            pl.BlockSpec((1, hw, ck), lambda b: (b, 0, 0)),
            pl.BlockSpec((1, ck), lambda b: (0, 0)),
            pl.BlockSpec((1, ck), lambda b: (0, 0)),
            pl.BlockSpec((ck, BOTTLENECK), lambda b: (0, 0)),
            pl.BlockSpec((1, BOTTLENECK), lambda b: (0, 0)),
            pl.BlockSpec((1, BOTTLENECK), lambda b: (0, 0)),
            pl.BlockSpec((9, BOTTLENECK, GROWTH), lambda b: (0, 0, 0)),
        ],
        out_specs=pl.BlockSpec((1, hw, GROWTH), lambda b: (b, 0, 0)),
        scratch_shapes=[pltpu.VMEM(((h + 4) * w, BOTTLENECK), jnp.bfloat16)],
        compiler_params=pltpu.CompilerParams(
            dimension_semantics=("parallel",),
            vmem_limit_bytes=_VMEM_LIMIT),
    )(buf, ps, pt, w1, es, et, w2)


def _transition_kernel(x_ref, s_ref, t_ref, w_ref, o_ref, *, cin):
    """norm+relu, exact 2x2 average (pool commutes with the bias-free 1x1 conv), conv."""
    h2 = o_ref.shape[1]
    for i in range(h2):
        xi = x_ref[0, i]                                          # (2, W2, 2*cin)
        ai = jnp.maximum(xi.astype(jnp.float32) * s_ref[...] + t_ref[...], 0.0)
        quad = (ai[0, :, 0:cin] + ai[0, :, cin:] +
                ai[1, :, 0:cin] + ai[1, :, cin:])
        avg = (0.25 * quad).astype(jnp.bfloat16)                  # (W2, cin)
        o_ref[0, i] = jnp.dot(avg, w_ref[...],
                              preferred_element_type=jnp.float32).astype(o_ref.dtype)


@partial(jax.jit, static_argnames=("h", "w"))
def transition(buf, s2, t2, wt, *, h, w):
    n, _, cin = buf.shape
    cout = wt.shape[1]
    h2, w2 = h // 2, w // 2
    x = buf.reshape(n, h2, 2, w2, 2 * cin)     # free view reshape of (n, h*w, cin)
    out = pl.pallas_call(
        partial(_transition_kernel, cin=cin),
        out_shape=jax.ShapeDtypeStruct((n, h2, w2, cout), jnp.bfloat16),
        grid=(n,),
        in_specs=[pl.BlockSpec((1, h2, 2, w2, 2 * cin), lambda b: (b, 0, 0, 0, 0)),
                  pl.BlockSpec((1, 2 * cin), lambda b: (0, 0)),
                  pl.BlockSpec((1, 2 * cin), lambda b: (0, 0)),
                  pl.BlockSpec((cin, cout), lambda b: (0, 0))],
        out_specs=pl.BlockSpec((1, h2, w2, cout), lambda b: (b, 0, 0, 0)),
        compiler_params=pltpu.CompilerParams(
            dimension_semantics=("parallel",),
            vmem_limit_bytes=_VMEM_LIMIT),
    )(x, s2, t2, wt)
    return out.reshape(n, h2 * w2, cout)


def _maxpool_h_kernel(x_ref, o_ref):
    ph = o_ref.shape[1]
    x = x_ref[0]                               # (PH+1, 2, OW, C)
    o_ref[0] = jnp.maximum(jnp.maximum(x[0:ph, 0], x[0:ph, 1]), x[1:ph + 1, 0])


def _maxpool_w_kernel(x_ref, o_ref):
    pw = o_ref.shape[2]
    c = o_ref.shape[3]
    x = x_ref[0]                               # (PH, PW+1, 2C)
    a = x[:, 0:pw, 0:c]
    b = x[:, 0:pw, c:2 * c]
    d = x[:, 1:pw + 1, 0:c]
    o_ref[0] = jnp.maximum(jnp.maximum(a, b), d)


def maxpool_h(x):
    n, php1, _, ow, c = x.shape
    ph = php1 - 1
    return pl.pallas_call(
        _maxpool_h_kernel,
        out_shape=jax.ShapeDtypeStruct((n, ph, ow, c), x.dtype),
        grid=(n,),
        in_specs=[pl.BlockSpec((1, php1, 2, ow, c), lambda b: (b, 0, 0, 0, 0))],
        out_specs=pl.BlockSpec((1, ph, ow, c), lambda b: (b, 0, 0, 0)),
        compiler_params=pltpu.CompilerParams(
            dimension_semantics=("parallel",), vmem_limit_bytes=_VMEM_LIMIT),
    )(x)


def maxpool_w(x):
    n, ph, pwp1, c2 = x.shape
    pw, c = pwp1 - 1, c2 // 2
    return pl.pallas_call(
        _maxpool_w_kernel,
        out_shape=jax.ShapeDtypeStruct((n, ph, pw, c), x.dtype),
        grid=(n,),
        in_specs=[pl.BlockSpec((1, ph, pwp1, c2), lambda b: (b, 0, 0, 0))],
        out_specs=pl.BlockSpec((1, ph, pw, c), lambda b: (b, 0, 0, 0)),
        compiler_params=pltpu.CompilerParams(
            dimension_semantics=("parallel",), vmem_limit_bytes=_VMEM_LIMIT),
    )(x)


def _head_kernel(x_ref, s_ref, t_ref, o_ref):
    x = x_ref[0].astype(jnp.float32)                           # (HW, C)
    a = jnp.maximum(x * s_ref[...] + t_ref[...], 0.0)
    o_ref[0] = jnp.mean(a, axis=0, keepdims=True)


@jax.jit
def head(buf, s5, t5, cls_w, cls_b):
    n, hw, c = buf.shape
    pooled = pl.pallas_call(
        _head_kernel,
        out_shape=jax.ShapeDtypeStruct((n, 1, c), jnp.float32),
        grid=(n,),
        in_specs=[pl.BlockSpec((1, hw, c), lambda b: (b, 0, 0)),
                  pl.BlockSpec((1, c), lambda b: (0, 0)),
                  pl.BlockSpec((1, c), lambda b: (0, 0))],
        out_specs=pl.BlockSpec((1, 1, c), lambda b: (b, 0, 0)),
        compiler_params=pltpu.CompilerParams(
            dimension_semantics=("parallel",), vmem_limit_bytes=_VMEM_LIMIT),
    )(buf, s5, t5)
    # Tiny (n x 1024) @ (1024 x 3) GEMV: plain XLA dot beats a padded Pallas launch.
    return pooled.reshape(n, c) @ cls_w + cls_b


# ------------------------------------------------------------------
# JAX glue: im2col (stem 7x7 conv only)
# ------------------------------------------------------------------

def _extract_patches(x, kh, kw, stride, pad):
    N, H, W, C = x.shape
    if pad > 0:
        x = jnp.pad(x, ((0, 0), (pad, pad), (pad, pad), (0, 0)))
    OH = (H + 2 * pad - kh) // stride + 1
    OW = (W + 2 * pad - kw) // stride + 1
    cols = []
    for i in range(kh):
        for j in range(kw):
            cols.append(x[:, i:i + stride * OH:stride, j:j + stride * OW:stride, :])
    patches = jnp.stack(cols, axis=3)  # (N, OH, OW, kh*kw, C)
    return patches, OH, OW


# ------------------------------------------------------------------
# Jitted network stages
# ------------------------------------------------------------------

@jax.jit
def stem(x_nchw, w0, s0, t0):
    """conv0 (7x7 s2 p3) + norm0 + relu0 (fused epilogue), then 3x3 s2 p1 max pool."""
    x = jnp.transpose(x_nchw, (0, 2, 3, 1)).astype(jnp.bfloat16)   # NCHW -> NHWC
    n = x.shape[0]
    patches, oh, ow = _extract_patches(x, 7, 7, 2, 3)
    y = matmul_bn_relu(patches.reshape(n * oh * ow, -1), w0, s0, t0)
    c = y.shape[-1]
    y = y.reshape(n, oh, ow, c)
    ph, pw = oh // 2, ow // 2
    # Zero padding == -inf for this pool because inputs are post-ReLU (>= 0).
    yp = jnp.pad(y, ((0, 0), (1, 1), (0, 0), (0, 0)))
    yh = maxpool_h(yp.reshape(n, ph + 1, 2, ow, c))                # H-direction pass
    yw = jnp.pad(yh, ((0, 0), (0, 0), (1, 1), (0, 0)))
    out = maxpool_w(yw.reshape(n, ph, pw + 1, 2 * c))              # W-direction pass
    return out.reshape(n, ph * pw, c)


@partial(jax.jit, static_argnames=("h", "w", "cf"))
def dense_block(x2d, buckets, *, h, w, cf):
    """One _DenseBlock: lax.scan per cin-bucket, writing into a persistent buffer."""
    n, hw, c0 = x2d.shape
    buf = jnp.pad(x2d.astype(jnp.bfloat16), ((0, 0), (0, 0), (0, cf - c0)))
    for bp in buckets:
        def body(carry, xs):
            ps, pt, w1, es, et, w2, start = xs
            y2 = dense_layer(carry, ps, pt, w1, es, et, w2, h=h, w=w)
            carry = jax.lax.dynamic_update_slice(carry, y2, (0, 0, start))
            return carry, None
        buf, _ = jax.lax.scan(
            body, buf,
            (bp["ps"], bp["pt"], bp["w1"], bp["es"], bp["et"], bp["w2"], bp["start"]))
    return buf


# ------------------------------------------------------------------
# Parameters (deterministic synthetic init; shapes exactly densenet121)
# ------------------------------------------------------------------

def make_params(seed=0):
    rng = np.random.RandomState(seed)

    def conv_w(cout, cin, kh, kw):
        fan_in = cin * kh * kw
        wgt = rng.normal(0.0, np.sqrt(2.0 / fan_in), size=(cout, cin, kh, kw))
        return jnp.asarray(wgt, jnp.float32)

    def bn_p(c):
        return dict(
            gamma=jnp.asarray(1.0 + 0.1 * rng.uniform(-1, 1, c), jnp.float32),
            beta=jnp.asarray(0.01 * rng.normal(size=c), jnp.float32),
            mean=jnp.asarray(0.01 * rng.normal(size=c), jnp.float32),
            var=jnp.asarray(1.0 + 0.1 * rng.uniform(0, 1, c), jnp.float32),
        )

    params = {"conv0": conv_w(NUM_INIT_FEATURES, 3, 7, 7),
              "norm0": bn_p(NUM_INIT_FEATURES)}
    blocks, transitions = [], []
    c = NUM_INIT_FEATURES
    for bi, n_layers in enumerate(BLOCK_CONFIG):
        layers = []
        for li in range(n_layers):
            cin = c + li * GROWTH
            layers.append(dict(
                norm1=bn_p(cin),
                conv1=conv_w(BOTTLENECK, cin, 1, 1),
                norm2=bn_p(BOTTLENECK),
                conv2=conv_w(GROWTH, BOTTLENECK, 3, 3),
            ))
        blocks.append(layers)
        c = c + n_layers * GROWTH
        if bi != len(BLOCK_CONFIG) - 1:
            transitions.append(dict(norm=bn_p(c), conv=conv_w(c // 2, c, 1, 1)))
            c = c // 2
    params["blocks"] = blocks
    params["transitions"] = transitions
    params["norm5"] = bn_p(c)  # c == 1024
    params["cls_w"] = jnp.asarray(
        rng.normal(0.0, 1.0 / np.sqrt(c), size=(NUM_CLASSES, c)), jnp.float32)
    params["cls_b"] = jnp.asarray(0.01 * rng.normal(size=NUM_CLASSES), jnp.float32)
    return params


def _bn_scale_shift(bn, eps=BN_EPS):
    scale = bn["gamma"] / jnp.sqrt(bn["var"] + eps)
    shift = bn["beta"] - bn["mean"] * scale
    return scale.astype(jnp.float32), shift.astype(jnp.float32)


def prepare_params(raw):
    """Convert torch-layout params into kernel-ready form (bf16 weights, folded BN,
    per-bucket zero-padded conv1 scale/shift/weights)."""
    prep = {}
    prep["w0"] = (jnp.transpose(raw["conv0"], (2, 3, 1, 0))
                  .reshape(7 * 7 * 3, NUM_INIT_FEATURES).astype(jnp.bfloat16))
    s0, t0 = _bn_scale_shift(raw["norm0"])
    prep["s0"], prep["t0"] = s0[None, :], t0[None, :]

    prep_blocks, prep_trans = [], []
    c = NUM_INIT_FEATURES
    for bi, layers in enumerate(raw["blocks"]):
        cf = c + len(layers) * GROWTH
        buckets, cur_ck, cur = [], None, None
        for li, lp in enumerate(layers):
            cin = c + li * GROWTH
            ck = min(((cin + 255) // 256) * 256, cf)   # bucketed padded width
            if ck != cur_ck:
                cur = dict(ps=[], pt=[], w1=[], es=[], et=[], w2=[], start=[])
                buckets.append(cur)
                cur_ck = ck
            s1, t1 = _bn_scale_shift(lp["norm1"])
            # scale, shift AND weights are all zero-padded -> padded channels contribute 0.
            cur["ps"].append(jnp.zeros((1, ck), jnp.float32).at[0, :cin].set(s1))
            cur["pt"].append(jnp.zeros((1, ck), jnp.float32).at[0, :cin].set(t1))
            w1 = jnp.transpose(lp["conv1"], (2, 3, 1, 0)).reshape(cin, BOTTLENECK)
            cur["w1"].append(jnp.zeros((ck, BOTTLENECK), jnp.float32)
                             .at[:cin].set(w1).astype(jnp.bfloat16))
            s2, t2 = _bn_scale_shift(lp["norm2"])
            cur["es"].append(s2[None, :])
            cur["et"].append(t2[None, :])
            cur["w2"].append(jnp.transpose(lp["conv2"], (2, 3, 1, 0))
                             .reshape(9, BOTTLENECK, GROWTH).astype(jnp.bfloat16))
            cur["start"].append(cin)
        buckets = tuple(
            dict(ps=jnp.stack(b["ps"]), pt=jnp.stack(b["pt"]), w1=jnp.stack(b["w1"]),
                 es=jnp.stack(b["es"]), et=jnp.stack(b["et"]), w2=jnp.stack(b["w2"]),
                 start=jnp.asarray(b["start"], jnp.int32))
            for b in buckets)
        prep_blocks.append(dict(cf=cf, buckets=buckets))
        c = cf
        if bi != len(BLOCK_CONFIG) - 1:
            t = raw["transitions"][bi]
            st, sh = _bn_scale_shift(t["norm"])
            prep_trans.append(dict(
                s=jnp.concatenate([st, st])[None, :],     # tiled over the 2x2 pixel pair
                t=jnp.concatenate([sh, sh])[None, :],
                w=jnp.transpose(t["conv"], (2, 3, 1, 0)).reshape(c, c // 2)
                  .astype(jnp.bfloat16)))
            c = c // 2
    prep["blocks"] = prep_blocks
    prep["transitions"] = prep_trans

    s5, t5 = _bn_scale_shift(raw["norm5"])
    prep["s5"], prep["t5"] = s5[None, :], t5[None, :]
    prep["cls_w"] = raw["cls_w"].T.astype(jnp.float32)
    prep["cls_b"] = raw["cls_b"].astype(jnp.float32)
    return prep


# ------------------------------------------------------------------
# Forward pass (mirrors torchvision DenseNet.forward, eval mode)
# ------------------------------------------------------------------

def densenet_forward(x_nchw, prep):
    hin, win = x_nchw.shape[2], x_nchw.shape[3]
    oh, ow = _conv_out(hin, 7, 2, 3), _conv_out(win, 7, 2, 3)
    h, w = oh // 2, ow // 2

    x2d = stem(x_nchw, prep["w0"], prep["s0"], prep["t0"])   # (N, h*w, 64)

    nblocks = len(prep["blocks"])
    buf = None
    for bi, bp in enumerate(prep["blocks"]):
        buf = dense_block(x2d, bp["buckets"], h=h, w=w, cf=bp["cf"])
        if bi != nblocks - 1:
            tp = prep["transitions"][bi]
            x2d = transition(buf, tp["s"], tp["t"], tp["w"], h=h, w=w)
            h //= 2
            w //= 2

    # norm5 + relu + adaptive_avg_pool2d + flatten + classifier
    return head(buf, prep["s5"], prep["t5"], prep["cls_w"], prep["cls_b"])


if __name__ == "__main__":
    raw_params = make_params(0)
    prep_params = prepare_params(raw_params)
    # Smallest spatial size that survives densenet121's /32 downsampling: 32x32.
    x = jax.random.normal(jax.random.PRNGKey(0), (2, 3, 32, 32), jnp.float32)
    out = densenet_forward(x, prep_params)
    out = jax.block_until_ready(out)
    assert out.shape == (2, NUM_CLASSES)
    assert bool(jnp.all(jnp.isfinite(out)))
    print("KERNEL_OK")
</pallas_src>

<mosaic_0001>
module attributes {stable_mosaic.version = 11 : i64} {
  func.func @_mm_epi_kernel(%arg0: i32, %arg1: i32, %arg2: memref<512x147xbf16, #tpu.memory_space<vmem>>, %arg3: memref<147x64xbf16, #tpu.memory_space<vmem>>, %arg4: memref<1x64xf32, #tpu.memory_space<vmem>>, %arg5: memref<1x64xf32, #tpu.memory_space<vmem>>, %arg6: memref<512x64xbf16, #tpu.memory_space<vmem>>) attributes {dimension_semantics = [#tpu.dimension_semantics<parallel>, #tpu.dimension_semantics<parallel>], iteration_bounds = array<i64: 1, 1>, scalar_prefetch = 0 : i64, scratch_operands = 0 : i64, tpu.core_type = #tpu.core_type<tc>, window_params = [{transform_indices = @transform_0, window_bounds = array<i64: 512, 147>}, {transform_indices = @transform_1, window_bounds = array<i64: 147, 64>}, {transform_indices = @transform_2, window_bounds = array<i64: 1, 64>}, {transform_indices = @transform_3, window_bounds = array<i64: 1, 64>}, {transform_indices = @transform_4, window_bounds = array<i64: 512, 64>}]} {
    %c0 = arith.constant 0 : index
    %c0_0 = arith.constant 0 : index
    %0 = vector.load %arg2[%c0, %c0_0] : memref<512x147xbf16, #tpu.memory_space<vmem>>, vector<512x147xbf16>
    %c0_1 = arith.constant 0 : index
    %c0_2 = arith.constant 0 : index
    %1 = vector.load %arg3[%c0_1, %c0_2] : memref<147x64xbf16, #tpu.memory_space<vmem>>, vector<147x64xbf16>
    %cst = arith.constant dense<0.000000e+00> : vector<512x64xf32>
    %2 = tpu.matmul %0, %1, %cst {dimension_numbers = #tpu.dot_dimension_numbers<[1], [0], [0], [1], [0, 0, 1, 1], [], []>} : vector<512x147xbf16>, vector<147x64xbf16>, vector<512x64xf32> -> vector<512x64xf32>
    %c0_3 = arith.constant 0 : index
    %c0_4 = arith.constant 0 : index
    %3 = vector.load %arg4[%c0_3, %c0_4] : memref<1x64xf32, #tpu.memory_space<vmem>>, vector<1x64xf32>
    %4 = vector.broadcast %3 : vector<1x64xf32> to vector<512x64xf32>
    %5 = arith.mulf %2, %4 : vector<512x64xf32>
    %c0_5 = arith.constant 0 : index
    %c0_6 = arith.constant 0 : index
    %6 = vector.load %arg5[%c0_5, %c0_6] : memref<1x64xf32, #tpu.memory_space<vmem>>, vector<1x64xf32>
    %7 = vector.broadcast %6 : vector<1x64xf32> to vector<512x64xf32>
    %8 = arith.addf %5, %7 : vector<512x64xf32>
    %cst_7 = arith.constant 0.000000e+00 : f32
    %9 = vector.broadcast %cst_7 : f32 to vector<512x64xf32>
    %10 = arith.maximumf %8, %9 : vector<512x64xf32>
    %11 = arith.truncf %10 : vector<512x64xf32> to vector<512x64xbf16>
    %c0_8 = arith.constant 0 : index
    %c0_9 = arith.constant 0 : index
    %12 = vector.load %arg6[%c0_8, %c0_9] : memref<512x64xbf16, #tpu.memory_space<vmem>>, vector<512x64xbf16>
    tpu.vector_store %arg6[%c0_8, %c0_9], %11 {strides = array<i32>} : memref<512x64xbf16, #tpu.memory_space<vmem>>, vector<512x64xbf16>,
    return
  }
  func.func @transform_0(%arg0: i32, %arg1: i32) -> (i32, i32) {
    %c0_i32 = arith.constant 0 : i32
    %c0_i32_0 = arith.constant 0 : i32
    return %arg0, %c0_i32 : i32, i32
  }
  func.func @transform_1(%arg0: i32, %arg1: i32) -> (i32, i32) {
    %c0_i32 = arith.constant 0 : i32
    %c0_i32_0 = arith.constant 0 : i32
    return %c0_i32, %arg1 : i32, i32
  }
  func.func @transform_2(%arg0: i32, %arg1: i32) -> (i32, i32) {
    %c0_i32 = arith.constant 0 : i32
    %c0_i32_0 = arith.constant 0 : i32
    return %c0_i32, %arg1 : i32, i32
  }
  func.func @transform_3(%arg0: i32, %arg1: i32) -> (i32, i32) {
    %c0_i32 = arith.constant 0 : i32
    %c0_i32_0 = arith.constant 0 : i32
    return %c0_i32, %arg1 : i32, i32
  }
  func.func @transform_4(%arg0: i32, %arg1: i32) -> (i32, i32) {
    %c0_i32 = arith.constant 0 : i32
    return %arg0, %arg1 : i32, i32
  }
}

module attributes {stable_mosaic.version = 11 : i64} {
  func.func @_maxpool_h_kernel(%arg0: i32, %arg1: memref<1x9x2x16x64xbf16, #tpu.memory_space<vmem>>, %arg2: memref<1x8x16x64xbf16, #tpu.memory_space<vmem>>) attributes {dimension_semantics = [#tpu.dimension_semantics<parallel>], iteration_bounds = array<i64: 2>, scalar_prefetch = 0 : i64, scratch_operands = 0 : i64, tpu.core_type = #tpu.core_type<tc>, window_params = [{transform_indices = @transform_0, window_bounds = array<i64: 1, 9, 2, 16, 64>}, {transform_indices = @transform_1, window_bounds = array<i64: 1, 8, 16, 64>}]} {
    %c0 = arith.constant 0 : index
    %c0_0 = arith.constant 0 : index
    %c0_1 = arith.constant 0 : index
    %c0_2 = arith.constant 0 : index
    %c0_3 = arith.constant 0 : index
    %0 = vector.load %arg1[%c0, %c0_0, %c0_1, %c0_2, %c0_3] : memref<1x9x2x16x64xbf16, #tpu.memory_space<vmem>>, vector<1x9x2x16x64xbf16>
    %1 = vector.shape_cast %0 : vector<1x9x2x16x64xbf16> to vector<9x2x16x64xbf16>
    %2 = vector.extract_strided_slice %1 {offsets = [0, 0, 0, 0], sizes = [8, 1, 16, 64], strides = [1, 1, 1, 1]} : vector<9x2x16x64xbf16> to vector<8x1x16x64xbf16>
    %3 = vector.shape_cast %2 : vector<8x1x16x64xbf16> to vector<8x16x64xbf16>
    %4 = vector.extract_strided_slice %1 {offsets = [0, 1, 0, 0], sizes = [8, 1, 16, 64], strides = [1, 1, 1, 1]} : vector<9x2x16x64xbf16> to vector<8x1x16x64xbf16>
    %5 = vector.shape_cast %4 : vector<8x1x16x64xbf16> to vector<8x16x64xbf16>
    %6 = arith.maximumf %3, %5 : vector<8x16x64xbf16>
    %7 = vector.extract_strided_slice %1 {offsets = [1, 0, 0, 0], sizes = [8, 1, 16, 64], strides = [1, 1, 1, 1]} : vector<9x2x16x64xbf16> to vector<8x1x16x64xbf16>
    %8 = vector.shape_cast %7 : vector<8x1x16x64xbf16> to vector<8x16x64xbf16>
    %9 = arith.maximumf %6, %8 : vector<8x16x64xbf16>
    %c0_4 = arith.constant 0 : index
    %c0_5 = arith.constant 0 : index
    %c0_6 = arith.constant 0 : index
    %c0_7 = arith.constant 0 : index
    %10 = vector.load %arg2[%c0_4, %c0_5, %c0_6, %c0_7] : memref<1x8x16x64xbf16, #tpu.memory_space<vmem>>, vector<1x8x16x64xbf16>
    %11 = vector.shape_cast %10 : vector<1x8x16x64xbf16> to vector<8x16x64xbf16>
    %12 = vector.shape_cast %9 : vector<8x16x64xbf16> to vector<1x8x16x64xbf16>
    tpu.vector_store %arg2[%c0_4, %c0_5, %c0_6, %c0_7], %12 {strides = array<i32>} : memref<1x8x16x64xbf16, #tpu.memory_space<vmem>>, vector<1x8x16x64xbf16>,
    return
  }
  func.func @transform_0(%arg0: i32) -> (i32, i32, i32, i32, i32) {
    %c0_i32 = arith.constant 0 : i32
    %c0_i32_0 = arith.constant 0 : i32
    %c0_i32_1 = arith.constant 0 : i32
    %c0_i32_2 = arith.constant 0 : i32
    %c0_i32_3 = arith.constant 0 : i32
    return %arg0, %c0_i32, %c0_i32_0, %c0_i32_1, %c0_i32_2 : i32, i32, i32, i32, i32
  }
  func.func @transform_1(%arg0: i32) -> (i32, i32, i32, i32) {
    %c0_i32 = arith.constant 0 : i32
    %c0_i32_0 = arith.constant 0 : i32
    %c0_i32_1 = arith.constant 0 : i32
    %c0_i32_2 = arith.constant 0 : i32
    return %arg0, %c0_i32, %c0_i32_0, %c0_i32_1 : i32, i32, i32, i32
  }
}

module attributes {stable_mosaic.version = 11 : i64} {
  func.func @_maxpool_w_kernel(%arg0: i32, %arg1: memref<1x8x9x128xbf16, #tpu.memory_space<vmem>>, %arg2: memref<1x8x8x64xbf16, #tpu.memory_space<vmem>>) attributes {dimension_semantics = [#tpu.dimension_semantics<parallel>], iteration_bounds = array<i64: 2>, scalar_prefetch = 0 : i64, scratch_operands = 0 : i64, tpu.core_type = #tpu.core_type<tc>, window_params = [{transform_indices = @transform_0, window_bounds = array<i64: 1, 8, 9, 128>}, {transform_indices = @transform_1, window_bounds = array<i64: 1, 8, 8, 64>}]} {
    %c0 = arith.constant 0 : index
    %c0_0 = arith.constant 0 : index
    %c0_1 = arith.constant 0 : index
    %c0_2 = arith.constant 0 : index
    %0 = vector.load %arg1[%c0, %c0_0, %c0_1, %c0_2] : memref<1x8x9x128xbf16, #tpu.memory_space<vmem>>, vector<1x8x9x128xbf16>
    %1 = vector.shape_cast %0 : vector<1x8x9x128xbf16> to vector<8x9x128xbf16>
    %2 = vector.extract_strided_slice %1 {offsets = [0, 0, 0], sizes = [8, 8, 64], strides = [1, 1, 1]} : vector<8x9x128xbf16> to vector<8x8x64xbf16>
    %3 = vector.extract_strided_slice %1 {offsets = [0, 0, 64], sizes = [8, 8, 64], strides = [1, 1, 1]} : vector<8x9x128xbf16> to vector<8x8x64xbf16>
    %4 = vector.extract_strided_slice %1 {offsets = [0, 1, 0], sizes = [8, 8, 64], strides = [1, 1, 1]} : vector<8x9x128xbf16> to vector<8x8x64xbf16>
    %5 = arith.maximumf %2, %3 : vector<8x8x64xbf16>
    %6 = arith.maximumf %5, %4 : vector<8x8x64xbf16>
    %c0_3 = arith.constant 0 : index
    %c0_4 = arith.constant 0 : index
    %c0_5 = arith.constant 0 : index
    %c0_6 = arith.constant 0 : index
    %7 = vector.load %arg2[%c0_3, %c0_4, %c0_5, %c0_6] : memref<1x8x8x64xbf16, #tpu.memory_space<vmem>>, vector<1x8x8x64xbf16>
    %8 = vector.shape_cast %7 : vector<1x8x8x64xbf16> to vector<8x8x64xbf16>
    %9 = vector.shape_cast %6 : vector<8x8x64xbf16> to vector<1x8x8x64xbf16>
    tpu.vector_store %arg2[%c0_3, %c0_4, %c0_5, %c0_6], %9 {strides = array<i32>} : memref<1x8x8x64xbf16, #tpu.memory_space<vmem>>, vector<1x8x8x64xbf16>,
    return
  }
  func.func @transform_0(%arg0: i32) -> (i32, i32, i32, i32) {
    %c0_i32 = arith.constant 0 : i32
    %c0_i32_0 = arith.constant 0 : i32
    %c0_i32_1 = arith.constant 0 : i32
    %c0_i32_2 = arith.constant 0 : i32
    return %arg0, %c0_i32, %c0_i32_0, %c0_i32_1 : i32, i32, i32, i32
  }
  func.func @transform_1(%arg0: i32) -> (i32, i32, i32, i32) {
    %c0_i32 = arith.constant 0 : i32
    %c0_i32_0 = arith.constant 0 : i32
    %c0_i32_1 = arith.constant 0 : i32
    %c0_i32_2 = arith.constant 0 : i32
    return %arg0, %c0_i32, %c0_i32_0, %c0_i32_1 : i32, i32, i32, i32
  }
}

</mosaic_0001>

<llo_original>
// kernel: stem.4
$region0: #{stem.4}
  #allocation0 [shape = 'u32[]', space=smem, size = 0x4, offset = 0x4, fixed_abs, tag = 'smem constant byte address 0x4 - core index']
  #allocation1 [shape = 'u32[144,128]{1,0:T(1,128)}', space=vmem, size = 0x12000, scoped, tag = 'internal scratch']
  %s0 = inlined_call_operand.vmem [shape: bf16[2,9,2,16,64], index: 0, kind: input, shape index: {}]
  %s1 = inlined_call_operand.vmem [shape: bf16[2,8,16,64], index: 1, kind: output, shape index: {}]
  %s2 = sld [smem:[#allocation0]]
  $region37: #{stem.4} parent=0
    _
  %s4 = ssub.s32 1, %s2
  %s5 = scalar_select 0, %s4, %s2
  loop: start=0, step=1, limit=4
  $region2: #{stem.4} parent=0 // loop_pre_header
    _
  $region3: #{stem.4} parent=0 // loop_header
    %s7 = sphi 0, %s11
    %p8 = scmp.ge.s32.totalorder %s7, 4
    %s17 = sphi 0, %s19
    %s20 = sphi 0, %s17
    %s21 = sphi 0, %s20
    %s37 = sphi 0, %s21
    %s43 = sphi 0, %s45
    %s46 = sphi 0, %s43
    %s47 = sphi 0, %s46
    %s63 = sphi 0, %s47
  $region4: #{stem.4} parent=0 // loop_header_branch
    %10 = sbr.rel (%p8) target = $region8
  $region5: #{stem.4} parent=0 // loop_body
    %s12 = ssub.s32 %s7, 1
    %s13 = ssub.s32 %s7, 2
    %s14 = sadd.s32 %s7, 1
    %s15 = ssub.s32 %s7, %s14
    %p16 = scmp.eq.s32.totalorder %s15, 0
    %s18 = sadd.s32 %s17, 1
    %s19 = scalar_select %p16, %s17, %s18
    %p22 = pneg %p16
    %p23 = scmp.eq.s32.totalorder %s7, 1
    %p24 = por %p22, %p23
    %p25 = scmp.ne.s32.totalorder %s17, %s20
    %p26 = scmp.eq.s32.totalorder %s7, 0
    %p27 = por %p25, %p26
    %p28 = scmp.ne.s32.totalorder %s17, %s20
    %p29 = scmp.eq.s32.totalorder %s12, 1
    %p30 = por %p28, %p29
    %p31 = scmp.ne.s32.totalorder %s20, %s21
    %p32 = scmp.eq.s32.totalorder %s12, 0
    %p33 = por %p31, %p32
    %p34 = scmp.ne.s32.totalorder %s20, %s21
    %p35 = scmp.eq.s32.totalorder %s13, 1
    %p36 = por %p34, %p35
    %p38 = scmp.ne.s32.totalorder %s21, %s37
    %p39 = scmp.eq.s32.totalorder %s13, 0
    %p40 = por %p38, %p39
    %s41 = ssub.s32 %s7, %s14
    %p42 = scmp.eq.s32.totalorder %s41, 0
    %s44 = sadd.s32 %s43, 1
    %s45 = scalar_select %p42, %s43, %s44
    %p48 = pneg %p42
    %p49 = scmp.eq.s32.totalorder %s7, 1
    %p50 = por %p48, %p49
    %p51 = scmp.ne.s32.totalorder %s43, %s46
    %p52 = scmp.eq.s32.totalorder %s7, 0
    %p53 = por %p51, %p52
    %p54 = scmp.ne.s32.totalorder %s43, %s46
    %p55 = scmp.eq.s32.totalorder %s12, 1
    %p56 = por %p54, %p55
    %p57 = scmp.ne.s32.totalorder %s46, %s47
    %p58 = scmp.eq.s32.totalorder %s12, 0
    %p59 = por %p57, %p58
    %p60 = scmp.ne.s32.totalorder %s46, %s47
    %p61 = scmp.eq.s32.totalorder %s13, 1
    %p62 = por %p60, %p61
    %p64 = scmp.ne.s32.totalorder %s47, %s63
    %p65 = scmp.eq.s32.totalorder %s13, 0
    %p66 = por %p64, %p65
    %p67 = scmp.le.s32.totalorder 1, %s7
    %p68 = scmp.lt.s32.totalorder %s7, 3
    %p69 = pnand %p67, %p68
    %p70 = pneg %p69
    // Predicated region
    $region9: #{stem.4} parent=5 // pred_check
      _
    $region10: #{stem.4} parent=5 // pred_check_branch
      %72 = sbr.rel (%p69) target = $region12
    $region11: #{stem.4} parent=5 // pred_region
      %s73 = ssub.s32 %s7, 1
    $region12: #{stem.4} parent=5 // pred_fallthru
      _
    %p74 = scmp.lt.s32.totalorder %s7, 2
    // Predicated region
    $region13: #{stem.4} parent=5 // pred_check
      %p75 = pneg %p74
    $region14: #{stem.4} parent=5 // pred_check_branch
      %77 = sbr.rel (%p75) target = $region16
    $region15: #{stem.4} parent=5 // pred_region
      // Predicated region
      $region17: #{stem.4} parent=15 // pred_check
        %p78 = pneg %p27
      $region18: #{stem.4} parent=15 // pred_check_branch
        %80 = sbr.rel (%p78) target = $region20
      $region19: #{stem.4} parent=15 // pred_region
        %p81 = scmp.lt.s32.totalorder %s7, 1
        %s82 = scalar_select %p81, %s7, 1
        %s83 = smul.addr %s82, 36
        %s84 = smul.addr %s83, 4
        %s85 = scalar_lea.vmem %s0, %s84
      $region20: #{stem.4} parent=15 // pred_fallthru
        _
    $region16: #{stem.4} parent=5 // pred_fallthru
      _
    %p86 = scmp.le.s32.totalorder 1, %s7
    %p87 = scmp.lt.s32.totalorder %s7, 3
    %p88 = pnand %p86, %p87
    %p89 = pneg %p88
    // Predicated region
    $region21: #{stem.4} parent=5 // pred_check
      _
    $region22: #{stem.4} parent=5 // pred_check_branch
      %91 = sbr.rel (%p88) target = $region24
    $region23: #{stem.4} parent=5 // pred_region
      %s92 = ssub.s32 %s7, 1
      %p93 = scmp.lt.s32.totalorder %s12, 1
      %s94 = scalar_select %p93, %s12, 1
      %s95 = smul.addr %s94, 36
      %s96 = smul.addr %s95, 4
      %s97 = scalar_lea.vmem %s0, %s96
      %p98 = pneg %p33
      %p99 = pneg %p30
      %p100 = pneg %p59
      %p101 = pneg %p56
      %p102 = scmp.lt.s32.totalorder %s12, 1
      %s103 = scalar_select %p102, %s12, 1
      %s104 = smul.addr %s103, 16
      %s105 = smul.addr %s104, 4
      %s106 = scalar_lea.vmem %s1, %s105
      %p107 = scmp.lt.s32.totalorder %s12, 1
      %s108 = scalar_select %p107, %s12, 1
      %s109 = smul.addr %s108, 36
      %s110 = smul.addr %s109, 4
      %s111 = scalar_lea.vmem %s0, %s110
      %p112 = scmp.lt.s32.totalorder %s12, 1
      %s113 = scalar_select %p112, %s12, 1
      %s114 = smul.addr %s113, 16
      %s115 = smul.addr %s114, 4
      %s116 = scalar_lea.vmem %s1, %s115
      %v117 = vld [vmem:[%s111] sm:$0xf]
      %v118 = vld [vmem:[%s111 + $0x4] sm:$0xf]
      %v119 = vld [vmem:[%s111 + $0x8] sm:$0xf]
      %v120 = vld [vmem:[%s111 + $0xc] sm:$0xf]
      %v121 = vld [vmem:[%s111 + $0x10] sm:$0xf]
      %v122 = vld [vmem:[%s111 + $0x14] sm:$0xf]
      %v123 = vld [vmem:[%s111 + $0x18] sm:$0xf]
      %v124 = vld [vmem:[%s111 + $0x1c] sm:$0xf]
      %v125 = vld [vmem:[%s111 + $0x20] sm:$0xf]
      %v126 = vld [vmem:[%s111 + $0x24] sm:$0xf]
      %v127 = vld [vmem:[%s111 + $0x28] sm:$0xf]
      %v128 = vld [vmem:[%s111 + $0x2c] sm:$0xf]
      %v129 = vld [vmem:[%s111 + $0x30] sm:$0xf]
      %v130 = vld [vmem:[%s111 + $0x34] sm:$0xf]
      %v131 = vld [vmem:[%s111 + $0x38] sm:$0xf]
      %v132 = vld [vmem:[%s111 + $0x3c] sm:$0xf]
      %v133 = vld [vmem:[%s111 + $0x40] sm:$0xf]
      %v134 = vld [vmem:[%s111 + $0x44] sm:$0xf]
      %v135 = vld [vmem:[%s111 + $0x48] sm:$0xf]
      %v136 = vld [vmem:[%s111 + $0x4c] sm:$0xf]
      %v137 = vld [vmem:[%s111 + $0x50] sm:$0xf]
      %v138 = vld [vmem:[%s111 + $0x54] sm:$0xf]
      %v139 = vld [vmem:[%s111 + $0x58] sm:$0xf]
      %v140 = vld [vmem:[%s111 + $0x5c] sm:$0xf]
      %v141 = vld [vmem:[%s111 + $0x60] sm:$0xf]
      %v142 = vld [vmem:[%s111 + $0x64] sm:$0xf]
      %v143 = vld [vmem:[%s111 + $0x68] sm:$0xf]
      %v144 = vld [vmem:[%s111 + $0x6c] sm:$0xf]
      %v145 = vld [vmem:[%s111 + $0x70] sm:$0xf]
      %v146 = vld [vmem:[%s111 + $0x74] sm:$0xf]
      %v147 = vld [vmem:[%s111 + $0x78] sm:$0xf]
      %v148 = vld [vmem:[%s111 + $0x7c] sm:$0xf]
      %v149 = vld [vmem:[%s111 + $0x80] sm:$0xf]
      %v150 = vld [vmem:[%s111 + $0x84] sm:$0xf]
      %v151 = vmax.bf16 %v117, %v119
      %v152 = vmax.bf16 %v118, %v120
      %v153 = vmax.bf16 %v121, %v123
      %v154 = vmax.bf16 %v122, %v124
      %v155 = vmax.bf16 %v125, %v127
      %v156 = vmax.bf16 %v126, %v128
      %v157 = vmax.bf16 %v129, %v131
      %v158 = vmax.bf16 %v130, %v132
      %v159 = vmax.bf16 %v133, %v135
      %v160 = vmax.bf16 %v134, %v136
      %v161 = vmax.bf16 %v137, %v139
      %v162 = vmax.bf16 %v138, %v140
      %v163 = vmax.bf16 %v141, %v143
      %v164 = vmax.bf16 %v142, %v144
      %v165 = vmax.bf16 %v145, %v147
      %v166 = vmax.bf16 %v146, %v148
      %v167 = vmax.bf16 %v151, %v121
      %v168 = vmax.bf16 %v152, %v122
      %v169 = vmax.bf16 %v153, %v125
      %v170 = vmax.bf16 %v154, %v126
      %v171 = vmax.bf16 %v155, %v129
      %v172 = vmax.bf16 %v156, %v130
      %v173 = vmax.bf16 %v157, %v133
      %v174 = vmax.bf16 %v158, %v134
      %v175 = vmax.bf16 %v159, %v137
      %v176 = vmax.bf16 %v160, %v138
      %v177 = vmax.bf16 %v161, %v141
      %v178 = vmax.bf16 %v162, %v142
      %v179 = vmax.bf16 %v163, %v145
      %v180 = vmax.bf16 %v164, %v146
      %v181 = vmax.bf16 %v165, %v149
      %v182 = vmax.bf16 %v166, %v150
      %vm183 = vcmask 519168
      %184 = vst.msk [vmem:[%s116] sm:$0xf] %vm183, %v167
      %185 = vst.msk [vmem:[%s116 + $0x4] sm:$0xf] %vm183, %v168
      %186 = vst.msk [vmem:[%s116 + $0x8] sm:$0xf] %vm183, %v169
      %187 = vst.msk [vmem:[%s116 + $0xc] sm:$0xf] %vm183, %v170
      %188 = vst.msk [vmem:[%s116 + $0x10] sm:$0xf] %vm183, %v171
      %189 = vst.msk [vmem:[%s116 + $0x14] sm:$0xf] %vm183, %v172
      %190 = vst.msk [vmem:[%s116 + $0x18] sm:$0xf] %vm183, %v173
      %191 = vst.msk [vmem:[%s116 + $0x1c] sm:$0xf] %vm183, %v174
      %192 = vst.msk [vmem:[%s116 + $0x20] sm:$0xf] %vm183, %v175
      %193 = vst.msk [vmem:[%s116 + $0x24] sm:$0xf] %vm183, %v176
      %194 = vst.msk [vmem:[%s116 + $0x28] sm:$0xf] %vm183, %v177
      %195 = vst.msk [vmem:[%s116 + $0x2c] sm:$0xf] %vm183, %v178
      %196 = vst.msk [vmem:[%s116 + $0x30] sm:$0xf] %vm183, %v179
      %197 = vst.msk [vmem:[%s116 + $0x34] sm:$0xf] %vm183, %v180
      %198 = vst.msk [vmem:[%s116 + $0x38] sm:$0xf] %vm183, %v181
      %199 = vst.msk [vmem:[%s116 + $0x3c] sm:$0xf] %vm183, %v182
      %p200 = scmp.lt.s32.totalorder %s12, 1
      %s201 = scalar_select %p200, %s12, 1
      %s202 = smul.addr %s201, 16
      %s203 = smul.addr %s202, 4
      %s204 = scalar_lea.vmem %s1, %s203
      // Predicated region
      $region25: #{stem.4} parent=23 // pred_check
        %p205 = pneg %p56
      $region26: #{stem.4} parent=23 // pred_check_branch
        %207 = sbr.rel (%p205) target = $region28
      $region27: #{stem.4} parent=23 // pred_region
        _
      $region28: #{stem.4} parent=23 // pred_fallthru
        _
    $region24: #{stem.4} parent=5 // pred_fallthru
      _
    %p208 = scmp.le.s32.totalorder 2, %s7
    // Predicated region
    $region29: #{stem.4} parent=5 // pred_check
      %p209 = pneg %p208
    $region30: #{stem.4} parent=5 // pred_check_branch
      %211 = sbr.rel (%p209) target = $region32
    $region31: #{stem.4} parent=5 // pred_region
      %s212 = ssub.s32 %s7, 2
      // Predicated region
      $region33: #{stem.4} parent=31 // pred_check
        %p213 = pneg %p62
      $region34: #{stem.4} parent=31 // pred_check_branch
        %215 = sbr.rel (%p213) target = $region36
      $region35: #{stem.4} parent=31 // pred_region
        %p216 = scmp.lt.s32.totalorder %s13, 1
        %s217 = scalar_select %p216, %s13, 1
        %s218 = smul.addr %s217, 16
        %s219 = smul.addr %s218, 4
        %s220 = scalar_lea.vmem %s1, %s219
      $region36: #{stem.4} parent=31 // pred_fallthru
        _
    $region32: #{stem.4} parent=5 // pred_fallthru
      _
  $region6: #{stem.4} parent=0 // loop_footer
    %s11 = sadd.s32 1, %s7
  $region7: #{stem.4} parent=0 // loop_footer_branch
    %6 = sbr.rel target = $region3
  $region8: #{stem.4} parent=0 // loop_exit
    _

// kernel: stem.5
$region0: #{stem.5}
  #allocation0 [shape = 'u32[]', space=smem, size = 0x4, offset = 0x4, fixed_abs, tag = 'smem constant byte address 0x4 - core index']
  #allocation1 [shape = 'u32[144,128]{1,0:T(1,128)}', space=vmem, size = 0x12000, scoped, tag = 'internal scratch']
  %s0 = inlined_call_operand.vmem [shape: bf16[2,8,9,128], index: 0, kind: input, shape index: {}]
  %s1 = inlined_call_operand.hbm [shape: bf16[2,8,8,64], index: 1, kind: output, shape index: {}]
  %s2 = sld [smem:[#allocation0]]
  $region37: #{stem.5} parent=0
    _
  %s4 = ssub.s32 1, %s2
  %s5 = scalar_select 0, %s4, %s2
  $region1: #{stem.5} parent=0
    #allocation2 [shape = 'u8[32768]{0}', space=vmem, size = 0x8000, scoped, tag = 'output window, operand 0']
    #allocation3 [shape = 's32[2]{0}', space=sflag, size = 0x8, scoped, tag = 'scoped memory for stem.5']
    %6 = vsyncpa [#allocation3], 0
    %s7 = scalar_lea.sflag [#allocation3], 1
    %8 = vsyncpa %s7, 0
    loop: start=0, step=1, limit=4
    $region2: #{stem.5} parent=1 // loop_pre_header
      _
    $region3: #{stem.5} parent=1 // loop_header
      %s10 = sphi 0, %s14
      %p11 = scmp.ge.s32.totalorder %s10, 4
      %s20 = sphi 0, %s22
      %s23 = sphi 0, %s20
      %s24 = sphi 0, %s23
      %s40 = sphi 0, %s24
      %s46 = sphi 0, %s48
      %s49 = sphi 0, %s46
      %s50 = sphi 0, %s49
      %s66 = sphi 0, %s50
    $region4: #{stem.5} parent=1 // loop_header_branch
      %13 = sbr.rel (%p11) target = $region8
    $region5: #{stem.5} parent=1 // loop_body
      %s15 = ssub.s32 %s10, 1
      %s16 = ssub.s32 %s10, 2
      %s17 = sadd.s32 %s10, 1
      %s18 = ssub.s32 %s10, %s17
      %p19 = scmp.eq.s32.totalorder %s18, 0
      %s21 = sadd.s32 %s20, 1
      %s22 = scalar_select %p19, %s20, %s21
      %p25 = pneg %p19
      %p26 = scmp.eq.s32.totalorder %s10, 1
      %p27 = por %p25, %p26
      %p28 = scmp.ne.s32.totalorder %s20, %s23
      %p29 = scmp.eq.s32.totalorder %s10, 0
      %p30 = por %p28, %p29
      %p31 = scmp.ne.s32.totalorder %s20, %s23
      %p32 = scmp.eq.s32.totalorder %s15, 1
      %p33 = por %p31, %p32
      %p34 = scmp.ne.s32.totalorder %s23, %s24
      %p35 = scmp.eq.s32.totalorder %s15, 0
      %p36 = por %p34, %p35
      %p37 = scmp.ne.s32.totalorder %s23, %s24
      %p38 = scmp.eq.s32.totalorder %s16, 1
      %p39 = por %p37, %p38
      %p41 = scmp.ne.s32.totalorder %s24, %s40
      %p42 = scmp.eq.s32.totalorder %s16, 0
      %p43 = por %p41, %p42
      %s44 = ssub.s32 %s10, %s17
      %p45 = scmp.eq.s32.totalorder %s44, 0
      %s47 = sadd.s32 %s46, 1
      %s48 = scalar_select %p45, %s46, %s47
      %p51 = pneg %p45
      %p52 = scmp.eq.s32.totalorder %s10, 1
      %p53 = por %p51, %p52
      %p54 = scmp.ne.s32.totalorder %s46, %s49
      %p55 = scmp.eq.s32.totalorder %s10, 0
      %p56 = por %p54, %p55
      %p57 = scmp.ne.s32.totalorder %s46, %s49
      %p58 = scmp.eq.s32.totalorder %s15, 1
      %p59 = por %p57, %p58
      %p60 = scmp.ne.s32.totalorder %s49, %s50
      %p61 = scmp.eq.s32.totalorder %s15, 0
      %p62 = por %p60, %p61
      %p63 = scmp.ne.s32.totalorder %s49, %s50
      %p64 = scmp.eq.s32.totalorder %s16, 1
      %p65 = por %p63, %p64
      %p67 = scmp.ne.s32.totalorder %s50, %s66
      %p68 = scmp.eq.s32.totalorder %s16, 0
      %p69 = por %p67, %p68
      %p70 = scmp.le.s32.totalorder 1, %s10
      %p71 = scmp.lt.s32.totalorder %s10, 3
      %p72 = pnand %p70, %p71
      %p73 = pneg %p72
      // Predicated region
      $region9: #{stem.5} parent=5 // pred_check
        _
      $region10: #{stem.5} parent=5 // pred_check_branch
        %75 = sbr.rel (%p72) target = $region12
      $region11: #{stem.5} parent=5 // pred_region
        %s76 = ssub.s32 %s10, 1
      $region12: #{stem.5} parent=5 // pred_fallthru
        _
      %p77 = scmp.lt.s32.totalorder %s10, 2
      // Predicated region
      $region13: #{stem.5} parent=5 // pred_check
        %p78 = pneg %p77
      $region14: #{stem.5} parent=5 // pred_check_branch
        %80 = sbr.rel (%p78) target = $region16
      $region15: #{stem.5} parent=5 // pred_region
        // Predicated region
        $region17: #{stem.5} parent=15 // pred_check
          %p81 = pneg %p30
        $region18: #{stem.5} parent=15 // pred_check_branch
          %83 = sbr.rel (%p81) target = $region20
        $region19: #{stem.5} parent=15 // pred_region
          %p84 = scmp.lt.s32.totalorder %s10, 1
          %s85 = scalar_select %p84, %s10, 1
          %s86 = smul.addr %s85, 16
          %s87 = smul.addr %s86, 4
          %s88 = scalar_lea.vmem %s0, %s87
        $region20: #{stem.5} parent=15 // pred_fallthru
          _
      $region16: #{stem.5} parent=5 // pred_fallthru
        _
      %p89 = scmp.le.s32.totalorder 1, %s10
      %p90 = scmp.lt.s32.totalorder %s10, 3
      %p91 = pnand %p89, %p90
      %p92 = pneg %p91
      // Predicated region
      $region21: #{stem.5} parent=5 // pred_check
        _
      $region22: #{stem.5} parent=5 // pred_check_branch
        %94 = sbr.rel (%p91) target = $region24
      $region23: #{stem.5} parent=5 // pred_region
        %s95 = ssub.s32 %s10, 1
        %p96 = scmp.lt.s32.totalorder %s15, 1
        %s97 = scalar_select %p96, %s15, 1
        %s98 = smul.addr %s97, 16
        %s99 = smul.addr %s98, 4
        %s100 = scalar_lea.vmem %s0, %s99
        %p101 = pneg %p36
        %p102 = pneg %p33
        %p103 = pneg %p62
        %p104 = pneg %p59
        %s105 = sand.u32 %s49, 1
        %s106 = scalar_lea.sflag [#allocation3], %s105
        %s107 = sand.u32 %s49, 1
        %s108 = smul.addr %s107, 32
        %s109 = scalar_lea.vmem [#allocation2], %s108
        %p110 = scmp.lt.s32.totalorder %s15, 1
        %s111 = scalar_select %p110, %s15, 1
        %s112 = smul.addr %s111, 16
        %s113 = smul.addr %s112, 4
        %s114 = scalar_lea.vmem %s0, %s113
        %v115 = vld [vmem:[%s114] sm:$0xf]
        %v116 = vld [vmem:[%s114 + $0x4] sm:$0x1]
        %v117 = vld [vmem:[%s114 + $0x8] sm:$0xf]
        %v118 = vld [vmem:[%s114 + $0xc] sm:$0x1]
        %v119 = vld [vmem:[%s114 + $0x10] sm:$0xf]
        %v120 = vld [vmem:[%s114 + $0x14] sm:$0x1]
        %v121 = vld [vmem:[%s114 + $0x18] sm:$0xf]
        %v122 = vld [vmem:[%s114 + $0x1c] sm:$0x1]
        %v123 = vld [vmem:[%s114 + $0x20] sm:$0xf]
        %v124 = vld [vmem:[%s114 + $0x24] sm:$0x1]
        %v125 = vld [vmem:[%s114 + $0x28] sm:$0xf]
        %v126 = vld [vmem:[%s114 + $0x2c] sm:$0x1]
        %v127 = vld [vmem:[%s114 + $0x30] sm:$0xf]
        %v128 = vld [vmem:[%s114 + $0x34] sm:$0x1]
        %v129 = vld [vmem:[%s114 + $0x38] sm:$0xf]
        %v130 = vld [vmem:[%s114 + $0x3c] sm:$0x1]
        %139 = vrot.lane.b32.xlu0 %v115, 64
        %v140 = vpop.permute.xlu0 %139
        %141 = vrot.lane.b32.xlu0 %v117, 64
        %v142 = vpop.permute.xlu0 %141
        %143 = vrot.lane.b32.xlu0 %v119, 64
        %v144 = vpop.permute.xlu0 %143
        %145 = vrot.lane.b32.xlu0 %v121, 64
        %v146 = vpop.permute.xlu0 %145
        %147 = vrot.lane.b32.xlu0 %v123, 64
        %v148 = vpop.permute.xlu0 %147
        %149 = vrot.lane.b32.xlu0 %v125, 64
        %v150 = vpop.permute.xlu0 %149
        %151 = vrot.lane.b32.xlu0 %v127, 64
        %v152 = vpop.permute.xlu0 %151
        %153 = vrot.lane.b32.xlu0 %v129, 64
        %v154 = vpop.permute.xlu0 %153
        %v163 = vmax.bf16 %v115, %v140
        %v164 = vmax.bf16 %v117, %v142
        %v165 = vmax.bf16 %v119, %v144
        %v166 = vmax.bf16 %v121, %v146
        %v167 = vmax.bf16 %v123, %v148
        %v168 = vmax.bf16 %v125, %v150
        %v169 = vmax.bf16 %v127, %v152
        %v170 = vmax.bf16 %v129, %v154
        %vm171 = vsmask.f32 3328
        %vm172 = vsmask.f32 7440
        %vm173 = vmor %vm171, %vm172
        %v175 = vshrl.u32 %v115, 16
        %v177 = vrot.slane %v175, 4
        %v178 = vshll.u32 %v115, 16
        %v180 = vrot.slane %v178, 5
        %v181 = vor.u32 %v177, %v180
        %v182 = vrot.slane %v181, 4
        %v184 = vshll.u32 %v116, 16
        %v186 = vrot.slane %v184, 5
        %v187 = vsel %vm173, %v182, %v186
        %v189 = vshrl.u32 %v117, 16
        %v191 = vrot.slane %v189, 4
        %v192 = vshll.u32 %v117, 16
        %v194 = vrot.slane %v192, 5
        %v195 = vor.u32 %v191, %v194
        %v196 = vrot.slane %v195, 4
        %v198 = vshll.u32 %v118, 16
        %v200 = vrot.slane %v198, 5
        %v201 = vsel %vm173, %v196, %v200
        %v203 = vshrl.u32 %v119, 16
        %v205 = vrot.slane %v203, 4
        %v206 = vshll.u32 %v119, 16
        %v208 = vrot.slane %v206, 5
        %v209 = vor.u32 %v205, %v208
        %v210 = vrot.slane %v209, 4
        %v212 = vshll.u32 %v120, 16
        %v214 = vrot.slane %v212, 5
        %v215 = vsel %vm173, %v210, %v214
        %v217 = vshrl.u32 %v121, 16
        %v219 = vrot.slane %v217, 4
        %v220 = vshll.u32 %v121, 16
        %v222 = vrot.slane %v220, 5
        %v223 = vor.u32 %v219, %v222
        %v224 = vrot.slane %v223, 4
        %v226 = vshll.u32 %v122, 16
        %v228 = vrot.slane %v226, 5
        %v229 = vsel %vm173, %v224, %v228
        %v231 = vshrl.u32 %v123, 16
        %v233 = vrot.slane %v231, 4
        %v234 = vshll.u32 %v123, 16
        %v236 = vrot.slane %v234, 5
        %v237 = vor.u32 %v233, %v236
        %v238 = vrot.slane %v237, 4
        %v240 = vshll.u32 %v124, 16
        %v242 = vrot.slane %v240, 5
        %v243 = vsel %vm173, %v238, %v242
        %v245 = vshrl.u32 %v125, 16
        %v247 = vrot.slane %v245, 4
        %v248 = vshll.u32 %v125, 16
        %v250 = vrot.slane %v248, 5
        %v251 = vor.u32 %v247, %v250
        %v252 = vrot.slane %v251, 4
        %v254 = vshll.u32 %v126, 16
        %v256 = vrot.slane %v254, 5
        %v257 = vsel %vm173, %v252, %v256
        %v259 = vshrl.u32 %v127, 16
        %v261 = vrot.slane %v259, 4
        %v262 = vshll.u32 %v127, 16
        %v264 = vrot.slane %v262, 5
        %v265 = vor.u32 %v261, %v264
        %v266 = vrot.slane %v265, 4
        %v268 = vshll.u32 %v128, 16
        %v270 = vrot.slane %v268, 5
        %v271 = vsel %vm173, %v266, %v270
        %v273 = vshrl.u32 %v129, 16
        %v275 = vrot.slane %v273, 4
        %v276 = vshll.u32 %v129, 16
        %v278 = vrot.slane %v276, 5
        %v279 = vor.u32 %v275, %v278
        %v280 = vrot.slane %v279, 4
        %v282 = vshll.u32 %v130, 16
        %v284 = vrot.slane %v282, 5
        %v285 = vsel %vm173, %v280, %v284
        %v294 = vmax.bf16 %v163, %v187
        %v295 = vmax.bf16 %v164, %v201
        %v296 = vmax.bf16 %v165, %v215
        %v297 = vmax.bf16 %v166, %v229
        %v298 = vmax.bf16 %v167, %v243
        %v299 = vmax.bf16 %v168, %v257
        %v300 = vmax.bf16 %v169, %v271
        %v301 = vmax.bf16 %v170, %v285
        %vm302 = vcmask 519168
        %303 = vst.msk [vmem:[%s109] sm:$0xf] %vm302, %v294
        %304 = vst.msk [vmem:[%s109 + $0x4] sm:$0xf] %vm302, %v295
        %305 = vst.msk [vmem:[%s109 + $0x8] sm:$0xf] %vm302, %v296
        %306 = vst.msk [vmem:[%s109 + $0xc] sm:$0xf] %vm302, %v297
        %307 = vst.msk [vmem:[%s109 + $0x10] sm:$0xf] %vm302, %v298
        %308 = vst.msk [vmem:[%s109 + $0x14] sm:$0xf] %vm302, %v299
        %309 = vst.msk [vmem:[%s109 + $0x18] sm:$0xf] %vm302, %v300
        %310 = vst.msk [vmem:[%s109 + $0x1c] sm:$0xf] %vm302, %v301
        %s311 = sand.u32 %s49, 1
        %s312 = scalar_lea.sflag [#allocation3], %s311
        %s313 = sand.u32 %s49, 1
        %s314 = smul.addr %s313, 32
        %s315 = scalar_lea.vmem [#allocation2], %s314
        // Predicated region
        $region25: #{stem.5} parent=23 // pred_check
          %p316 = pneg %p59
        $region26: #{stem.5} parent=23 // pred_check_branch
          %318 = sbr.rel (%p316) target = $region28
        $region27: #{stem.5} parent=23 // pred_region
          %s320 = ssub.s32 512, 512
          %321 = vsyncadd %s312, %s320
          %s322 = smul.addr %s15, 8
          %s323 = smul.addr %s322, 64
          %s324 = scalar_lea.hbm %s1, %s323
          %s325 = sshll.u32 %s315, 4
          %s326 = int_to_ptr.vmem [resolvable:$true] %s325
          %331 = dma.vmem_to_hbm [thread:$0]  %s326, 512, %s324, %s312, 64, 64, 4
        $region28: #{stem.5} parent=23 // pred_fallthru
          _
      $region24: #{stem.5} parent=5 // pred_fallthru
        _
      %p332 = scmp.le.s32.totalorder 2, %s10
      // Predicated region
      $region29: #{stem.5} parent=5 // pred_check
        %p333 = pneg %p332
      $region30: #{stem.5} parent=5 // pred_check_branch
        %335 = sbr.rel (%p333) target = $region32
      $region31: #{stem.5} parent=5 // pred_region
        %s336 = ssub.s32 %s10, 2
        // Predicated region
        $region33: #{stem.5} parent=31 // pred_check
          %p337 = pneg %p65
        $region34: #{stem.5} parent=31 // pred_check_branch
          %339 = sbr.rel (%p337) target = $region36
        $region35: #{stem.5} parent=31 // pred_region
          %s340 = sand.u32 %s50, 1
          %s341 = scalar_lea.sflag [#allocation3], %s340
          %s342 = sand.u32 %s50, 1
          %s343 = smul.addr %s342, 32
          %s344 = scalar_lea.vmem [#allocation2], %s343
          %345 = dma.done %s341, 512
        $region36: #{stem.5} parent=31 // pred_fallthru
          _
      $region32: #{stem.5} parent=5 // pred_fallthru
        _
    $region6: #{stem.5} parent=1 // loop_footer
      %s14 = sadd.s32 1, %s10
    $region7: #{stem.5} parent=1 // loop_footer_branch
      %9 = sbr.rel target = $region3
    $region8: #{stem.5} parent=1 // loop_exit
      _
    %346 = vsyncpa [#allocation3], 1
    %s347 = scalar_lea.sflag [#allocation3], 1
    %348 = vsyncpa %s347, 1

// kernel: stem.3
$region0: #{stem.3}
  #allocation0 [shape = 'u32[]', space=smem, size = 0x4, offset = 0x4, fixed_abs, tag = 'smem constant byte address 0x4 - core index']
  #allocation1 [shape = 'u32[144,128]{1,0:T(1,128)}', space=vmem, size = 0x12000, scoped, tag = 'internal scratch']
  %s0 = inlined_call_operand.vmem [shape: bf16[512,147], index: 0, kind: input, shape index: {}]
  %s1 = inlined_call_operand.vmem [shape: bf16[147,64], index: 1, kind: input, shape index: {}]
  %s2 = inlined_call_operand.vmem [shape: f32[1,64], index: 2, kind: input, shape index: {}]
  %s3 = inlined_call_operand.vmem [shape: f32[1,64], index: 3, kind: input, shape index: {}]
  %s4 = inlined_call_operand.vmem [shape: bf16[512,64], index: 4, kind: output, shape index: {}]
  %s5 = sld [smem:[#allocation0]]
  $region26: #{stem.3} parent=0
    _
  %s7 = ssub.s32 1, %s5
  %s8 = scalar_select 0, %s7, %s5
  // Predicated region
  $region2: #{stem.3} parent=0 // pred_check
    _
  $region3: #{stem.3} parent=0 // pred_check_branch
    %10 = sbr.rel (0) target = $region5
  $region4: #{stem.3} parent=0 // pred_region
    _
  $region5: #{stem.3} parent=0 // pred_fallthru
    _
  // Predicated region
  $region6: #{stem.3} parent=0 // pred_check
    _
  $region7: #{stem.3} parent=0 // pred_check_branch
    %12 = sbr.rel (0) target = $region9
  $region8: #{stem.3} parent=0 // pred_region
    _
  $region9: #{stem.3} parent=0 // pred_fallthru
    _
  // Predicated region
  $region10: #{stem.3} parent=0 // pred_check
    _
  $region11: #{stem.3} parent=0 // pred_check_branch
    %14 = sbr.rel (0) target = $region13
  $region12: #{stem.3} parent=0 // pred_region
    _
  $region13: #{stem.3} parent=0 // pred_fallthru
    _
  // Predicated region
  $region14: #{stem.3} parent=0 // pred_check
    _
  $region15: #{stem.3} parent=0 // pred_check_branch
    %16 = sbr.rel (0) target = $region17
  $region16: #{stem.3} parent=0 // pred_region
    _
  $region17: #{stem.3} parent=0 // pred_fallthru
    _
  %v18 = vld [vmem:[%s0] sm:$0xff]
  %v19 = vld [vmem:[%s0 + $0x8] sm:$0xff]
  %v20 = vld [vmem:[%s0 + $0x10] sm:$0xff]
  %v21 = vld [vmem:[%s0 + $0x18] sm:$0xff]
  %v22 = vld [vmem:[%s0 + $0x20] sm:$0xff]
  %v23 = vld [vmem:[%s0 + $0x28] sm:$0xff]
  %v24 = vld [vmem:[%s0 + $0x30] sm:$0xff]
  %v25 = vld [vmem:[%s0 + $0x38] sm:$0xff]
  %v26 = vld [vmem:[%s0 + $0x40] sm:$0xff]
  %v27 = vld [vmem:[%s0 + $0x48] sm:$0xff]
  %v28 = vld [vmem:[%s0 + $0x50] sm:$0xff]
  %v29 = vld [vmem:[%s0 + $0x58] sm:$0xff]
  %v30 = vld [vmem:[%s0 + $0x60] sm:$0xff]
  %v31 = vld [vmem:[%s0 + $0x68] sm:$0xff]
  %v32 = vld [vmem:[%s0 + $0x70] sm:$0xff]
  %v33 = vld [vmem:[%s0 + $0x78] sm:$0xff]
  %v34 = vld [vmem:[%s0 + $0x80] sm:$0xff]
  %v35 = vld [vmem:[%s0 + $0x88] sm:$0xff]
  %v36 = vld [vmem:[%s0 + $0x90] sm:$0xff]
  %v37 = vld [vmem:[%s0 + $0x98] sm:$0xff]
  %v38 = vld [vmem:[%s0 + $0xa0] sm:$0xff]
  %v39 = vld [vmem:[%s0 + $0xa8] sm:$0xff]
  %v40 = vld [vmem:[%s0 + $0xb0] sm:$0xff]
  %v41 = vld [vmem:[%s0 + $0xb8] sm:$0xff]
  %v42 = vld [vmem:[%s0 + $0xc0] sm:$0xff]
  %v43 = vld [vmem:[%s0 + $0xc8] sm:$0xff]
  %v44 = vld [vmem:[%s0 + $0xd0] sm:$0xff]
  %v45 = vld [vmem:[%s0 + $0xd8] sm:$0xff]
  %v46 = vld [vmem:[%s0 + $0xe0] sm:$0xff]
  %v47 = vld [vmem:[%s0 + $0xe8] sm:$0xff]
  %v48 = vld [vmem:[%s0 + $0xf0] sm:$0xff]
  %v49 = vld [vmem:[%s0 + $0xf8] sm:$0xff]
  %v50 = vld [vmem:[%s0 + $0x100] sm:$0xff]
  %v51 = vld [vmem:[%s0 + $0x108] sm:$0xff]
  %v52 = vld [vmem:[%s0 + $0x110] sm:$0xff]
  %v53 = vld [vmem:[%s0 + $0x118] sm:$0xff]
  %v54 = vld [vmem:[%s0 + $0x120] sm:$0xff]
  %v55 = vld [vmem:[%s0 + $0x128] sm:$0xff]
  %v56 = vld [vmem:[%s0 + $0x130] sm:$0xff]
  %v57 = vld [vmem:[%s0 + $0x138] sm:$0xff]
  %v58 = vld [vmem:[%s0 + $0x140] sm:$0xff]
  %v59 = vld [vmem:[%s0 + $0x148] sm:$0xff]
  %v60 = vld [vmem:[%s0 + $0x150] sm:$0xff]
  %v61 = vld [vmem:[%s0 + $0x158] sm:$0xff]
  %v62 = vld [vmem:[%s0 + $0x160] sm:$0xff]
  %v63 = vld [vmem:[%s0 + $0x168] sm:$0xff]
  %v64 = vld [vmem:[%s0 + $0x170] sm:$0xff]
  %v65 = vld [vmem:[%s0 + $0x178] sm:$0xff]
  %v66 = vld [vmem:[%s0 + $0x180] sm:$0xff]
  %v67 = vld [vmem:[%s0 + $0x188] sm:$0xff]
  %v68 = vld [vmem:[%s0 + $0x190] sm:$0xff]
  %v69 = vld [vmem:[%s0 + $0x198] sm:$0xff]
  %v70 = vld [vmem:[%s0 + $0x1a0] sm:$0xff]
  %v71 = vld [vmem:[%s0 + $0x1a8] sm:$0xff]
  %v72 = vld [vmem:[%s0 + $0x1b0] sm:$0xff]
  %v73 = vld [vmem:[%s0 + $0x1b8] sm:$0xff]
  %v74 = vld [vmem:[%s0 + $0x1c0] sm:$0xff]
  %v75 = vld [vmem:[%s0 + $0x1c8] sm:$0xff]
  %v76 = vld [vmem:[%s0 + $0x1d0] sm:$0xff]
  %v77 = vld [vmem:[%s0 + $0x1d8] sm:$0xff]
  %v78 = vld [vmem:[%s0 + $0x1e0] sm:$0xff]
  %v79 = vld [vmem:[%s0 + $0x1e8] sm:$0xff]
  %v80 = vld [vmem:[%s0 + $0x1f0] sm:$0xff]
  %v81 = vld [vmem:[%s0 + $0x1f8] sm:$0xff]
  %v82 = vld [vmem:[%s1] sm:$0xf]
  %v83 = vld [vmem:[%s1 + $0x4] sm:$0xf]
  %v84 = vld [vmem:[%s1 + $0x8] sm:$0xf]
  %v85 = vld [vmem:[%s1 + $0xc] sm:$0xf]
  %v86 = vld [vmem:[%s1 + $0x10] sm:$0xf]
  %v87 = vld [vmem:[%s1 + $0x14] sm:$0xf]
  %v88 = vld [vmem:[%s1 + $0x18] sm:$0xf]
  %v89 = vld [vmem:[%s1 + $0x1c] sm:$0xf]
  %v90 = vld [vmem:[%s1 + $0x20] sm:$0xf]
  %v91 = vld [vmem:[%s1 + $0x24] sm:$0xf]
  %v92 = vld [vmem:[%s1 + $0x28] sm:$0xf]
  %v93 = vld [vmem:[%s1 + $0x2c] sm:$0xf]
  %v94 = vld [vmem:[%s1 + $0x30] sm:$0xf]
  %v95 = vld [vmem:[%s1 + $0x34] sm:$0xf]
  %v96 = vld [vmem:[%s1 + $0x38] sm:$0xf]
  %v97 = vld [vmem:[%s1 + $0x3c] sm:$0xf]
  %v98 = vld [vmem:[%s1 + $0x40] sm:$0xf]
  %v99 = vld [vmem:[%s1 + $0x44] sm:$0xf]
  %v100 = vld [vmem:[%s1 + $0x48] sm:$0x3]
  %v165 = vunpack.c.l.b16 %v18
  %v166 = vunpack.c.h.b16 %v18
  %v167 = vunpack.c.l.b16 %v19
  %v168 = vunpack.c.h.b16 %v19
  %v169 = vunpack.c.l.b16 %v20
  %v170 = vunpack.c.h.b16 %v20
  %v171 = vunpack.c.l.b16 %v21
  %v172 = vunpack.c.h.b16 %v21
  %v173 = vunpack.c.l.b16 %v22
  %v174 = vunpack.c.h.b16 %v22
  %v175 = vunpack.c.l.b16 %v23
  %v176 = vunpack.c.h.b16 %v23
  %v177 = vunpack.c.l.b16 %v24
  %v178 = vunpack.c.h.b16 %v24
  %v179 = vunpack.c.l.b16 %v25
  %v180 = vunpack.c.h.b16 %v25
  %v181 = vunpack.c.l.b16 %v26
  %v182 = vunpack.c.h.b16 %v26
  %v183 = vunpack.c.l.b16 %v27
  %v184 = vunpack.c.h.b16 %v27
  %v185 = vunpack.c.l.b16 %v28
  %v186 = vunpack.c.h.b16 %v28
  %v187 = vunpack.c.l.b16 %v29
  %v188 = vunpack.c.h.b16 %v29
  %v189 = vunpack.c.l.b16 %v30
  %v190 = vunpack.c.h.b16 %v30
  %v191 = vunpack.c.l.b16 %v31
  %v192 = vunpack.c.h.b16 %v31
  %v193 = vunpack.c.l.b16 %v32
  %v194 = vunpack.c.h.b16 %v32
  %v195 = vunpack.c.l.b16 %v33
  %v196 = vunpack.c.h.b16 %v33
  %v197 = vunpack.c.l.b16 %v34
  %v198 = vunpack.c.h.b16 %v34
  %v199 = vunpack.c.l.b16 %v35
  %v200 = vunpack.c.h.b16 %v35
  %v201 = vunpack.c.l.b16 %v36
  %v202 = vunpack.c.h.b16 %v36
  %v203 = vunpack.c.l.b16 %v37
  %v204 = vunpack.c.h.b16 %v37
  %v205 = vunpack.c.l.b16 %v38
  %v206 = vunpack.c.h.b16 %v38
  %v207 = vunpack.c.l.b16 %v39
  %v208 = vunpack.c.h.b16 %v39
  %v209 = vunpack.c.l.b16 %v40
  %v210 = vunpack.c.h.b16 %v40
  %v211 = vunpack.c.l.b16 %v41
  %v212 = vunpack.c.h.b16 %v41
  %v213 = vunpack.c.l.b16 %v42
  %v214 = vunpack.c.h.b16 %v42
  %v215 = vunpack.c.l.b16 %v43
  %v216 = vunpack.c.h.b16 %v43
  %v217 = vunpack.c.l.b16 %v44
  %v218 = vunpack.c.h.b16 %v44
  %v219 = vunpack.c.l.b16 %v45
  %v220 = vunpack.c.h.b16 %v45
  %v221 = vunpack.c.l.b16 %v46
  %v222 = vunpack.c.h.b16 %v46
  %v223 = vunpack.c.l.b16 %v47
  %v224 = vunpack.c.h.b16 %v47
  %v225 = vunpack.c.l.b16 %v48
  %v226 = vunpack.c.h.b16 %v48
  %v227 = vunpack.c.l.b16 %v49
  %v228 = vunpack.c.h.b16 %v49
  %v229 = vunpack.c.l.b16 %v50
  %v230 = vunpack.c.h.b16 %v50
  %v231 = vunpack.c.l.b16 %v51
  %v232 = vunpack.c.h.b16 %v51
  %v233 = vunpack.c.l.b16 %v52
  %v234 = vunpack.c.h.b16 %v52
  %v235 = vunpack.c.l.b16 %v53
  %v236 = vunpack.c.h.b16 %v53
  %v237 = vunpack.c.l.b16 %v54
  %v238 = vunpack.c.h.b16 %v54
  %v239 = vunpack.c.l.b16 %v55
  %v240 = vunpack.c.h.b16 %v55
  %v241 = vunpack.c.l.b16 %v56
  %v242 = vunpack.c.h.b16 %v56
  %v243 = vunpack.c.l.b16 %v57
  %v244 = vunpack.c.h.b16 %v57
  %v245 = vunpack.c.l.b16 %v58
  %v246 = vunpack.c.h.b16 %v58
  %v247 = vunpack.c.l.b16 %v59
  %v248 = vunpack.c.h.b16 %v59
  %v249 = vunpack.c.l.b16 %v60
  %v250 = vunpack.c.h.b16 %v60
  %v251 = vunpack.c.l.b16 %v61
  %v252 = vunpack.c.h.b16 %v61
  %v253 = vunpack.c.l.b16 %v62
  %v254 = vunpack.c.h.b16 %v62
  %v255 = vunpack.c.l.b16 %v63
  %v256 = vunpack.c.h.b16 %v63
  %v257 = vunpack.c.l.b16 %v64
  %v258 = vunpack.c.h.b16 %v64
  %v259 = vunpack.c.l.b16 %v65
  %v260 = vunpack.c.h.b16 %v65
  %v261 = vunpack.c.l.b16 %v66
  %v262 = vunpack.c.h.b16 %v66
  %v263 = vunpack.c.l.b16 %v67
  %v264 = vunpack.c.h.b16 %v67
  %v265 = vunpack.c.l.b16 %v68
  %v266 = vunpack.c.h.b16 %v68
  %v267 = vunpack.c.l.b16 %v69
  %v268 = vunpack.c.h.b16 %v69
  %v269 = vunpack.c.l.b16 %v70
  %v270 = vunpack.c.h.b16 %v70
  %v271 = vunpack.c.l.b16 %v71
  %v272 = vunpack.c.h.b16 %v71
  %v273 = vunpack.c.l.b16 %v72
  %v274 = vunpack.c.h.b16 %v72
  %v275 = vunpack.c.l.b16 %v73
  %v276 = vunpack.c.h.b16 %v73
  %v277 = vunpack.c.l.b16 %v74
  %v278 = vunpack.c.h.b16 %v74
  %v279 = vunpack.c.l.b16 %v75
  %v280 = vunpack.c.h.b16 %v75
  %v281 = vunpack.c.l.b16 %v76
  %v282 = vunpack.c.h.b16 %v76
  %v283 = vunpack.c.l.b16 %v77
  %v284 = vunpack.c.h.b16 %v77
  %v285 = vunpack.c.l.b16 %v78
  %v286 = vunpack.c.h.b16 %v78
  %v287 = vunpack.c.l.b16 %v79
  %v288 = vunpack.c.h.b16 %v79
  %v289 = vunpack.c.l.b16 %v80
  %v290 = vunpack.c.h.b16 %v80
  %v291 = vunpack.c.l.b16 %v81
  %v292 = vunpack.c.h.b16 %v81
  %v293 = vpack.c.b16 %v167, %v165
  %v294 = vpack.c.b16 %v168, %v166
  %v295 = vpack.c.b16 %v171, %v169
  %v296 = vpack.c.b16 %v172, %v170
  %v297 = vpack.c.b16 %v175, %v173
  %v298 = vpack.c.b16 %v176, %v174
  %v299 = vpack.c.b16 %v179, %v177
  %v300 = vpack.c.b16 %v180, %v178
  %v301 = vpack.c.b16 %v183, %v181
  %v302 = vpack.c.b16 %v184, %v182
  %v303 = vpack.c.b16 %v187, %v185
  %v304 = vpack.c.b16 %v188, %v186
  %v305 = vpack.c.b16 %v191, %v189
  %v306 = vpack.c.b16 %v192, %v190
  %v307 = vpack.c.b16 %v195, %v193
  %v308 = vpack.c.b16 %v196, %v194
  %v309 = vpack.c.b16 %v199, %v197
  %v310 = vpack.c.b16 %v200, %v198
  %v311 = vpack.c.b16 %v203, %v201
  %v312 = vpack.c.b16 %v204, %v202
  %v313 = vpack.c.b16 %v207, %v205
  %v314 = vpack.c.b16 %v208, %v206
  %v315 = vpack.c.b16 %v211, %v209
  %v316 = vpack.c.b16 %v212, %v210
  %v317 = vpack.c.b16 %v215, %v213
  %v318 = vpack.c.b16 %v216, %v214
  %v319 = vpack.c.b16 %v219, %v217
  %v320 = vpack.c.b16 %v220, %v218
  %v321 = vpack.c.b16 %v223, %v221
  %v322 = vpack.c.b16 %v224, %v222
  %v323 = vpack.c.b16 %v227, %v225
  %v324 = vpack.c.b16 %v228, %v226
  %v325 = vpack.c.b16 %v231, %v229
  %v326 = vpack.c.b16 %v232, %v230
  %v327 = vpack.c.b16 %v235, %v233
  %v328 = vpack.c.b16 %v236, %v234
  %v329 = vpack.c.b16 %v239, %v237
  %v330 = vpack.c.b16 %v240, %v238
  %v331 = vpack.c.b16 %v243, %v241
  %v332 = vpack.c.b16 %v244, %v242
  %v333 = vpack.c.b16 %v247, %v245
  %v334 = vpack.c.b16 %v248, %v246
  %v335 = vpack.c.b16 %v251, %v249
  %v336 = vpack.c.b16 %v252, %v250
  %v337 = vpack.c.b16 %v255, %v253
  %v338 = vpack.c.b16 %v256, %v254
  %v339 = vpack.c.b16 %v259, %v257
  %v340 = vpack.c.b16 %v260, %v258
  %v341 = vpack.c.b16 %v263, %v261
  %v342 = vpack.c.b16 %v264, %v262
  %v343 = vpack.c.b16 %v267, %v265
  %v344 = vpack.c.b16 %v268, %v266
  %v345 = vpack.c.b16 %v271, %v269
  %v346 = vpack.c.b16 %v272, %v270
  %v347 = vpack.c.b16 %v275, %v273
  %v348 = vpack.c.b16 %v276, %v274
  %v349 = vpack.c.b16 %v279, %v277
  %v350 = vpack.c.b16 %v280, %v278
  %v351 = vpack.c.b16 %v283, %v281
  %v352 = vpack.c.b16 %v284, %v282
  %v353 = vpack.c.b16 %v287, %v285
  %v354 = vpack.c.b16 %v288, %v286
  %v355 = vpack.c.b16 %v291, %v289
  %v356 = vpack.c.b16 %v292, %v290
  %v408 = vunpack.c.l.b16 %v82
  %v409 = vunpack.c.l.b16 %v83
  %v410 = vunpack.c.l.b16 %v84
  %v411 = vunpack.c.l.b16 %v85
  %v412 = vunpack.c.l.b16 %v86
  %v413 = vunpack.c.l.b16 %v87
  %v414 = vunpack.c.l.b16 %v88
  %v415 = vunpack.c.l.b16 %v89
  %v416 = vunpack.c.l.b16 %v90
  %v417 = vunpack.c.l.b16 %v91
  %v418 = vunpack.c.l.b16 %v92
  %v419 = vunpack.c.l.b16 %v93
  %v420 = vunpack.c.l.b16 %v94
  %v421 = vunpack.c.l.b16 %v95
  %v422 = vunpack.c.l.b16 %v96
  %v423 = vunpack.c.l.b16 %v97
  %v424 = vunpack.c.l.b16 %v98
  %v425 = vunpack.c.l.b16 %v99
  %v426 = vunpack.c.l.b16 %v100
  %v427 = vpack.c.b16 %v409, %v408
  %v428 = vpack.c.b16 %v411, %v410
  %v429 = vpack.c.b16 %v413, %v412
  %v430 = vpack.c.b16 %v415, %v414
  %v431 = vpack.c.b16 %v417, %v416
  %v432 = vpack.c.b16 %v419, %v418
  %v433 = vpack.c.b16 %v421, %v420
  %v434 = vpack.c.b16 %v423, %v422
  %v435 = vpack.c.b16 %v425, %v424
  %v436 = vpack.c.b16 %v426, %v426
  %vm446 = vcmask 154624
  %v448 = vsel %vm446, %v294, 0
  %v451 = vsel %vm446, %v296, 0
  %v454 = vsel %vm446, %v298, 0
  %v457 = vsel %vm446, %v300, 0
  %v460 = vsel %vm446, %v302, 0
  %v463 = vsel %vm446, %v304, 0
  %v466 = vsel %vm446, %v306, 0
  %v469 = vsel %vm446, %v308, 0
  %v472 = vsel %vm446, %v310, 0
  %v475 = vsel %vm446, %v312, 0
  %v478 = vsel %vm446, %v314, 0
  %v481 = vsel %vm446, %v316, 0
  %v484 = vsel %vm446, %v318, 0
  %v487 = vsel %vm446, %v320, 0
  %v490 = vsel %vm446, %v322, 0
  %v493 = vsel %vm446, %v324, 0
  %v496 = vsel %vm446, %v326, 0
  %v499 = vsel %vm446, %v328, 0
  %v502 = vsel %vm446, %v330, 0
  %v505 = vsel %vm446, %v332, 0
  %v508 = vsel %vm446, %v334, 0
  %v511 = vsel %vm446, %v336, 0
  %v514 = vsel %vm446, %v338, 0
  %v517 = vsel %vm446, %v340, 0
  %v520 = vsel %vm446, %v342, 0
  %v523 = vsel %vm446, %v344, 0
  %v526 = vsel %vm446, %v346, 0
  %v529 = vsel %vm446, %v348, 0
  %v532 = vsel %vm446, %v350, 0
  %v535 = vsel %vm446, %v352, 0
  %v538 = vsel %vm446, %v354, 0
  %v541 = vsel %vm446, %v356, 0
  %vm543 = vcmask 1040384
  %vm544 = vcmask 1041408
  %v545 = vsel %vm543, 4294967295, 65535
  %v546 = vsel %vm544, %v545, 0
  %v548 = vand.u32 %v436, %v546
  %550 = vmatprep.subr.bf16.mxu0 0
  %551 = vmatpush1.bf16.msra.mxu0 %v434
  %552 = vmatprep.subr.bf16.mxu0 0
  %553 = vmatpush1.bf16.msra.mxu0 %v433
  %554 = vmatprep.subr.bf16.mxu0 0
  %555 = vmatpush1.bf16.msra.mxu0 %v432
  %556 = vmatprep.subr.bf16.mxu0 0
  %557 = vmatpush1.bf16.msra.mxu0 %v431
  %558 = vmatprep.subr.bf16.mxu0 0
  %559 = vmatpush1.bf16.msra.mxu0 %v430
  %560 = vmatprep.subr.bf16.mxu0 0
  %561 = vmatpush1.bf16.msra.mxu0 %v429
  %562 = vmatprep.subr.bf16.mxu0 0
  %563 = vmatpush1.bf16.msra.mxu0 %v428
  %564 = vmatprep.subr.bf16.mxu0 0
  %565 = vmatpush1.bf16.msra.mxu0 %v427
  %566 = vmatprep.subr.bf16.mxu0 0
  %567 = vmatpush2.bf16.msra.mxu0 0
  %568 = vmatprep.subr.bf16.mxu0 0
  %569 = vmatpush2.bf16.msra.mxu0 0
  %570 = vmatprep.subr.bf16.mxu0 0
  %571 = vmatpush2.bf16.msra.mxu0 0
  %572 = vmatprep.subr.bf16.mxu0 0
  %573 = vmatpush2.bf16.msra.mxu0 0
  %574 = vmatprep.subr.bf16.mxu0 0
  %575 = vmatpush2.bf16.msra.mxu0 0
  %576 = vmatprep.subr.bf16.mxu0 0
  %577 = vmatpush2.bf16.msra.mxu0 0
  %578 = vmatprep.subr.bf16.mxu0 0
  %579 = vmatpush2.bf16.msra.mxu0 %v548
  %580 = vmatprep.subr.bf16.mxu0 0
  %581 = vmatpush2.bf16.msra.mxu0 %v435
  %582 = vmatprep.mubr.bf16.mxu0 %v448
  %583 = vmatmul.mubr.bf16.gmra.mxu0 %v293
  %v584 = vpop.f32.mrf.mxu0
  %v585 = vadd.f32 0.0, %v584
  %v586 = vpop.f32.mrf.mxu0
  %v587 = vpop.f32.mrf.mxu0
  %v588 = vadd.f32 0.0, %v587
  %v589 = vpop.f32.mrf.mxu0
  %590 = vmatprep.mubr.bf16.mxu0 %v451
  %591 = vmatmul.mubr.bf16.gmra.mxu0 %v295
  %v592 = vpop.f32.mrf.mxu0
  %v593 = vadd.f32 0.0, %v592
  %v594 = vpop.f32.mrf.mxu0
  %v595 = vpop.f32.mrf.mxu0
  %v596 = vadd.f32 0.0, %v595
  %v597 = vpop.f32.mrf.mxu0
  %598 = vmatprep.mubr.bf16.mxu0 %v454
  %599 = vmatmul.mubr.bf16.gmra.mxu0 %v297
  %v600 = vpop.f32.mrf.mxu0
  %v601 = vadd.f32 0.0, %v600
  %v602 = vpop.f32.mrf.mxu0
  %v603 = vpop.f32.mrf.mxu0
  %v604 = vadd.f32 0.0, %v603
  %v605 = vpop.f32.mrf.mxu0
  %606 = vmatprep.mubr.bf16.mxu0 %v457
  %607 = vmatmul.mubr.bf16.gmra.mxu0 %v299
  %v608 = vpop.f32.mrf.mxu0
  %v609 = vadd.f32 0.0, %v608
  %v610 = vpop.f32.mrf.mxu0
  %v611 = vpop.f32.mrf.mxu0
  %v612 = vadd.f32 0.0, %v611
  %v613 = vpop.f32.mrf.mxu0
  %614 = vmatprep.mubr.bf16.mxu0 %v460
  %615 = vmatmul.mubr.bf16.gmra.mxu0 %v301
  %v616 = vpop.f32.mrf.mxu0
  %v617 = vadd.f32 0.0, %v616
  %v618 = vpop.f32.mrf.mxu0
  %v619 = vpop.f32.mrf.mxu0
  %v620 = vadd.f32 0.0, %v619
  %v621 = vpop.f32.mrf.mxu0
  %622 = vmatprep.mubr.bf16.mxu0 %v463
  %623 = vmatmul.mubr.bf16.gmra.mxu0 %v303
  %v624 = vpop.f32.mrf.mxu0
  %v625 = vadd.f32 0.0, %v624
  %v626 = vpop.f32.mrf.mxu0
  %v627 = vpop.f32.mrf.mxu0
  %v628 = vadd.f32 0.0, %v627
  %v629 = vpop.f32.mrf.mxu0
  %630 = vmatprep.mubr.bf16.mxu0 %v466
  %631 = vmatmul.mubr.bf16.gmra.mxu0 %v305
  %v632 = vpop.f32.mrf.mxu0
  %v633 = vadd.f32 0.0, %v632
  %v634 = vpop.f32.mrf.mxu0
  %v635 = vpop.f32.mrf.mxu0
  %v636 = vadd.f32 0.0, %v635
  %v637 = vpop.f32.mrf.mxu0
  %638 = vmatprep.mubr.bf16.mxu0 %v469
  %639 = vmatmul.mubr.bf16.gmra.mxu0 %v307
  %v640 = vpop.f32.mrf.mxu0
  %v641 = vadd.f32 0.0, %v640
  %v642 = vpop.f32.mrf.mxu0
  %v643 = vpop.f32.mrf.mxu0
  %v644 = vadd.f32 0.0, %v643
  %v645 = vpop.f32.mrf.mxu0
  %646 = vmatprep.mubr.bf16.mxu0 %v472
  %647 = vmatmul.mubr.bf16.gmra.mxu0 %v309
  %v648 = vpop.f32.mrf.mxu0
  %v649 = vadd.f32 0.0, %v648
  %v650 = vpop.f32.mrf.mxu0
  %v651 = vpop.f32.mrf.mxu0
  %v652 = vadd.f32 0.0, %v651
  %v653 = vpop.f32.mrf.mxu0
  %654 = vmatprep.mubr.bf16.mxu0 %v475
  %655 = vmatmul.mubr.bf16.gmra.mxu0 %v311
  %v656 = vpop.f32.mrf.mxu0
  %v657 = vadd.f32 0.0, %v656
  %v658 = vpop.f32.mrf.mxu0
  %v659 = vpop.f32.mrf.mxu0
  %v660 = vadd.f32 0.0, %v659
  %v661 = vpop.f32.mrf.mxu0
  %662 = vmatprep.mubr.bf16.mxu0 %v478
  %663 = vmatmul.mubr.bf16.gmra.mxu0 %v313
  %v664 = vpop.f32.mrf.mxu0
  %v665 = vadd.f32 0.0, %v664
  %v666 = vpop.f32.mrf.mxu0
  %v667 = vpop.f32.mrf.mxu0
  %v668 = vadd.f32 0.0, %v667
  %v669 = vpop.f32.mrf.mxu0
  %670 = vmatprep.mubr.bf16.mxu0 %v481
  %671 = vmatmul.mubr.bf16.gmra.mxu0 %v315
  %v672 = vpop.f32.mrf.mxu0
  %v673 = vadd.f32 0.0, %v672
  %v674 = vpop.f32.mrf.mxu0
  %v675 = vpop.f32.mrf.mxu0
  %v676 = vadd.f32 0.0, %v675
  %v677 = vpop.f32.mrf.mxu0
  %678 = vmatprep.mubr.bf16.mxu0 %v484
  %679 = vmatmul.mubr.bf16.gmra.mxu0 %v317
  %v680 = vpop.f32.mrf.mxu0
  %v681 = vadd.f32 0.0, %v680
  %v682 = vpop.f32.mrf.mxu0
  %v683 = vpop.f32.mrf.mxu0
  %v684 = vadd.f32 0.0, %v683
  %v685 = vpop.f32.mrf.mxu0
  %686 = vmatprep.mubr.bf16.mxu0 %v487
  %687 = vmatmul.mubr.bf16.gmra.mxu0 %v319
  %v688 = vpop.f32.mrf.mxu0
  %v689 = vadd.f32 0.0, %v688
  %v690 = vpop.f32.mrf.mxu0
  %v691 = vpop.f32.mrf.mxu0
  %v692 = vadd.f32 0.0, %v691
  %v693 = vpop.f32.mrf.mxu0
  %694 = vmatprep.mubr.bf16.mxu0 %v490
  %695 = vmatmul.mubr.bf16.gmra.mxu0 %v321
  %v696 = vpop.f32.mrf.mxu0
  %v697 = vadd.f32 0.0, %v696
  %v698 = vpop.f32.mrf.mxu0
  %v699 = vpop.f32.mrf.mxu0
  %v700 = vadd.f32 0.0, %v699
  %v701 = vpop.f32.mrf.mxu0
  %702 = vmatprep.mubr.bf16.mxu0 %v493
  %703 = vmatmul.mubr.bf16.gmra.mxu0 %v323
  %v704 = vpop.f32.mrf.mxu0
  %v705 = vadd.f32 0.0, %v704
  %v706 = vpop.f32.mrf.mxu0
  %v707 = vpop.f32.mrf.mxu0
  %v708 = vadd.f32 0.0, %v707
  %v709 = vpop.f32.mrf.mxu0
  %710 = vmatprep.mubr.bf16.mxu0 %v496
  %711 = vmatmul.mubr.bf16.gmra.mxu0 %v325
  %v712 = vpop.f32.mrf.mxu0
  %v713 = vadd.f32 0.0, %v712
  %v714 = vpop.f32.mrf.mxu0
  %v715 = vpop.f32.mrf.mxu0
  %v716 = vadd.f32 0.0, %v715
  %v717 = vpop.f32.mrf.mxu0
  %718 = vmatprep.mubr.bf16.mxu0 %v499
  %719 = vmatmul.mubr.bf16.gmra.mxu0 %v327
  %v720 = vpop.f32.mrf.mxu0
  %v721 = vadd.f32 0.0, %v720
  %v722 = vpop.f32.mrf.mxu0
  %v723 = vpop.f32.mrf.mxu0
  %v724 = vadd.f32 0.0, %v723
  %v725 = vpop.f32.mrf.mxu0
  %726 = vmatprep.mubr.bf16.mxu0 %v502
  %727 = vmatmul.mubr.bf16.gmra.mxu0 %v329
  %v728 = vpop.f32.mrf.mxu0
  %v729 = vadd.f32 0.0, %v728
  %v730 = vpop.f32.mrf.mxu0
  %v731 = vpop.f32.mrf.mxu0
  %v732 = vadd.f32 0.0, %v731
  %v733 = vpop.f32.mrf.mxu0
  %734 = vmatprep.mubr.bf16.mxu0 %v505
  %735 = vmatmul.mubr.bf16.gmra.mxu0 %v331
  %v736 = vpop.f32.mrf.mxu0
  %v737 = vadd.f32 0.0, %v736
  %v738 = vpop.f32.mrf.mxu0
  %v739 = vpop.f32.mrf.mxu0
  %v740 = vadd.f32 0.0, %v739
  %v741 = vpop.f32.mrf.mxu0
  %742 = vmatprep.mubr.bf16.mxu0 %v508
  %743 = vmatmul.mubr.bf16.gmra.mxu0 %v333
  %v744 = vpop.f32.mrf.mxu0
  %v745 = vadd.f32 0.0, %v744
  %v746 = vpop.f32.mrf.mxu0
  %v747 = vpop.f32.mrf.mxu0
  %v748 = vadd.f32 0.0, %v747
  %v749 = vpop.f32.mrf.mxu0
  %750 = vmatprep.mubr.bf16.mxu0 %v511
  %751 = vmatmul.mubr.bf16.gmra.mxu0 %v335
  %v752 = vpop.f32.mrf.mxu0
  %v753 = vadd.f32 0.0, %v752
  %v754 = vpop.f32.mrf.mxu0
  %v755 = vpop.f32.mrf.mxu0
  %v756 = vadd.f32 0.0, %v755
  %v757 = vpop.f32.mrf.mxu0
  %758 = vmatprep.mubr.bf16.mxu0 %v514
  %759 = vmatmul.mubr.bf16.gmra.mxu0 %v337
  %v760 = vpop.f32.mrf.mxu0
  %v761 = vadd.f32 0.0, %v760
  %v762 = vpop.f32.mrf.mxu0
  %v763 = vpop.f32.mrf.mxu0
  %v764 = vadd.f32 0.0, %v763
  %v765 = vpop.f32.mrf.mxu0
  %766 = vmatprep.mubr.bf16.mxu0 %v517
  %767 = vmatmul.mubr.bf16.gmra.mxu0 %v339
  %v768 = vpop.f32.mrf.mxu0
  %v769 = vadd.f32 0.0, %v768
  %v770 = vpop.f32.mrf.mxu0
  %v771 = vpop.f32.mrf.mxu0
  %v772 = vadd.f32 0.0, %v771
  %v773 = vpop.f32.mrf.mxu0
  %774 = vmatprep.mubr.bf16.mxu0 %v520
  %775 = vmatmul.mubr.bf16.gmra.mxu0 %v341
  %v776 = vpop.f32.mrf.mxu0
  %v777 = vadd.f32 0.0, %v776
  %v778 = vpop.f32.mrf.mxu0
  %v779 = vpop.f32.mrf.mxu0
  %v780 = vadd.f32 0.0, %v779
  %v781 = vpop.f32.mrf.mxu0
  %782 = vmatprep.mubr.bf16.mxu0 %v523
  %783 = vmatmul.mubr.bf16.gmra.mxu0 %v343
  %v784 = vpop.f32.mrf.mxu0
  %v785 = vadd.f32 0.0, %v784
  %v786 = vpop.f32.mrf.mxu0
  %v787 = vpop.f32.mrf.mxu0
  %v788 = vadd.f32 0.0, %v787
  %v789 = vpop.f32.mrf.mxu0
  %790 = vmatprep.mubr.bf16.mxu0 %v526
  %791 = vmatmul.mubr.bf16.gmra.mxu0 %v345
  %v792 = vpop.f32.mrf.mxu0
  %v793 = vadd.f32 0.0, %v792
  %v794 = vpop.f32.mrf.mxu0
  %v795 = vpop.f32.mrf.mxu0
  %v796 = vadd.f32 0.0, %v795
  %v797 = vpop.f32.mrf.mxu0
  %798 = vmatprep.mubr.bf16.mxu0 %v529
  %799 = vmatmul.mubr.bf16.gmra.mxu0 %v347
  %v800 = vpop.f32.mrf.mxu0
  %v801 = vadd.f32 0.0, %v800
  %v802 = vpop.f32.mrf.mxu0
  %v803 = vpop.f32.mrf.mxu0
  %v804 = vadd.f32 0.0, %v803
  %v805 = vpop.f32.mrf.mxu0
  %806 = vmatprep.mubr.bf16.mxu0 %v532
  %807 = vmatmul.mubr.bf16.gmra.mxu0 %v349
  %v808 = vpop.f32.mrf.mxu0
  %v809 = vadd.f32 0.0, %v808
  %v810 = vpop.f32.mrf.mxu0
  %v811 = vpop.f32.mrf.mxu0
  %v812 = vadd.f32 0.0, %v811
  %v813 = vpop.f32.mrf.mxu0
  %814 = vmatprep.mubr.bf16.mxu0 %v535
  %815 = vmatmul.mubr.bf16.gmra.mxu0 %v351
  %v816 = vpop.f32.mrf.mxu0
  %v817 = vadd.f32 0.0, %v816
  %v818 = vpop.f32.mrf.mxu0
  %v819 = vpop.f32.mrf.mxu0
  %v820 = vadd.f32 0.0, %v819
  %v821 = vpop.f32.mrf.mxu0
  %822 = vmatprep.mubr.bf16.mxu0 %v538
  %823 = vmatmul.mubr.bf16.gmra.mxu0 %v353
  %v824 = vpop.f32.mrf.mxu0
  %v825 = vadd.f32 0.0, %v824
  %v826 = vpop.f32.mrf.mxu0
  %v827 = vpop.f32.mrf.mxu0
  %v828 = vadd.f32 0.0, %v827
  %v829 = vpop.f32.mrf.mxu0
  %830 = vmatprep.mubr.bf16.mxu0 %v541
  %831 = vmatmul.mubr.bf16.gmra.mxu0 %v355
  %v832 = vpop.f32.mrf.mxu0
  %v833 = vadd.f32 0.0, %v832
  %v834 = vpop.f32.mrf.mxu0
  %v835 = vpop.f32.mrf.mxu0
  %v836 = vadd.f32 0.0, %v835
  %v837 = vpop.f32.mrf.mxu0
  %838 = vdwg.mxu0
  %v839 = vld [vmem:[%s2] sm:$0x1]
  %v841 = vlaneseq
  %v842 = vshrl.u32 %v841, 7
  %v843 = vsub.s32 0, %v842
  %v844 = vrot.slane %v839, %v843
  %v846 = vmul.f32 %v585, %v844
  %v847 = vmul.f32 %v588, %v844
  %v848 = vmul.f32 %v593, %v844
  %v849 = vmul.f32 %v596, %v844
  %v850 = vmul.f32 %v601, %v844
  %v851 = vmul.f32 %v604, %v844
  %v852 = vmul.f32 %v609, %v844
  %v853 = vmul.f32 %v612, %v844
  %v854 = vmul.f32 %v617, %v844
  %v855 = vmul.f32 %v620, %v844
  %v856 = vmul.f32 %v625, %v844
  %v857 = vmul.f32 %v628, %v844
  %v858 = vmul.f32 %v633, %v844
  %v859 = vmul.f32 %v636, %v844
  %v860 = vmul.f32 %v641, %v844
  %v861 = vmul.f32 %v644, %v844
  %v862 = vmul.f32 %v649, %v844
  %v863 = vmul.f32 %v652, %v844
  %v864 = vmul.f32 %v657, %v844
  %v865 = vmul.f32 %v660, %v844
  %v866 = vmul.f32 %v665, %v844
  %v867 = vmul.f32 %v668, %v844
  %v868 = vmul.f32 %v673, %v844
  %v869 = vmul.f32 %v676, %v844
  %v870 = vmul.f32 %v681, %v844
  %v871 = vmul.f32 %v684, %v844
  %v872 = vmul.f32 %v689, %v844
  %v873 = vmul.f32 %v692, %v844
  %v874 = vmul.f32 %v697, %v844
  %v875 = vmul.f32 %v700, %v844
  %v876 = vmul.f32 %v705, %v844
  %v877 = vmul.f32 %v708, %v844
  %v878 = vmul.f32 %v713, %v844
  %v879 = vmul.f32 %v716, %v844
  %v880 = vmul.f32 %v721, %v844
  %v881 = vmul.f32 %v724, %v844
  %v882 = vmul.f32 %v729, %v844
  %v883 = vmul.f32 %v732, %v844
  %v884 = vmul.f32 %v737, %v844
  %v885 = vmul.f32 %v740, %v844
  %v886 = vmul.f32 %v745, %v844
  %v887 = vmul.f32 %v748, %v844
  %v888 = vmul.f32 %v753, %v844
  %v889 = vmul.f32 %v756, %v844
  %v890 = vmul.f32 %v761, %v844
  %v891 = vmul.f32 %v764, %v844
  %v892 = vmul.f32 %v769, %v844
  %v893 = vmul.f32 %v772, %v844
  %v894 = vmul.f32 %v777, %v844
  %v895 = vmul.f32 %v780, %v844
  %v896 = vmul.f32 %v785, %v844
  %v897 = vmul.f32 %v788, %v844
  %v898 = vmul.f32 %v793, %v844
  %v899 = vmul.f32 %v796, %v844
  %v900 = vmul.f32 %v801, %v844
  %v901 = vmul.f32 %v804, %v844
  %v902 = vmul.f32 %v809, %v844
  %v903 = vmul.f32 %v812, %v844
  %v904 = vmul.f32 %v817, %v844
  %v905 = vmul.f32 %v820, %v844
  %v906 = vmul.f32 %v825, %v844
  %v907 = vmul.f32 %v828, %v844
  %v908 = vmul.f32 %v833, %v844
  %v909 = vmul.f32 %v836, %v844
  %v910 = vld [vmem:[%s3] sm:$0x1]
  %v912 = vlaneseq
  %v913 = vshrl.u32 %v912, 7
  %v914 = vsub.s32 0, %v913
  %v915 = vrot.slane %v910, %v914
  %v917 = vadd.f32 %v846, %v915
  %v918 = vadd.f32 %v847, %v915
  %v919 = vadd.f32 %v848, %v915
  %v920 = vadd.f32 %v849, %v915
  %v921 = vadd.f32 %v850, %v915
  %v922 = vadd.f32 %v851, %v915
  %v923 = vadd.f32 %v852, %v915
  %v924 = vadd.f32 %v853, %v915
  %v925 = vadd.f32 %v854, %v915
  %v926 = vadd.f32 %v855, %v915
  %v927 = vadd.f32 %v856, %v915
  %v928 = vadd.f32 %v857, %v915
  %v929 = vadd.f32 %v858, %v915
  %v930 = vadd.f32 %v859, %v915
  %v931 = vadd.f32 %v860, %v915
  %v932 = vadd.f32 %v861, %v915
  %v933 = vadd.f32 %v862, %v915
  %v934 = vadd.f32 %v863, %v915
  %v935 = vadd.f32 %v864, %v915
  %v936 = vadd.f32 %v865, %v915
  %v937 = vadd.f32 %v866, %v915
  %v938 = vadd.f32 %v867, %v915
  %v939 = vadd.f32 %v868, %v915
  %v940 = vadd.f32 %v869, %v915
  %v941 = vadd.f32 %v870, %v915
  %v942 = vadd.f32 %v871, %v915
  %v943 = vadd.f32 %v872, %v915
  %v944 = vadd.f32 %v873, %v915
  %v945 = vadd.f32 %v874, %v915
  %v946 = vadd.f32 %v875, %v915
  %v947 = vadd.f32 %v876, %v915
  %v948 = vadd.f32 %v877, %v915
  %v949 = vadd.f32 %v878, %v915
  %v950 = vadd.f32 %v879, %v915
  %v951 = vadd.f32 %v880, %v915
  %v952 = vadd.f32 %v881, %v915
  %v953 = vadd.f32 %v882, %v915
  %v954 = vadd.f32 %v883, %v915
  %v955 = vadd.f32 %v884, %v915
  %v956 = vadd.f32 %v885, %v915
  %v957 = vadd.f32 %v886, %v915
  %v958 = vadd.f32 %v887, %v915
  %v959 = vadd.f32 %v888, %v915
  %v960 = vadd.f32 %v889, %v915
  %v961 = vadd.f32 %v890, %v915
  %v962 = vadd.f32 %v891, %v915
  %v963 = vadd.f32 %v892, %v915
  %v964 = vadd.f32 %v893, %v915
  %v965 = vadd.f32 %v894, %v915
  %v966 = vadd.f32 %v895, %v915
  %v967 = vadd.f32 %v896, %v915
  %v968 = vadd.f32 %v897, %v915
  %v969 = vadd.f32 %v898, %v915
  %v970 = vadd.f32 %v899, %v915
  %v971 = vadd.f32 %v900, %v915
  %v972 = vadd.f32 %v901, %v915
  %v973 = vadd.f32 %v902, %v915
  %v974 = vadd.f32 %v903, %v915
  %v975 = vadd.f32 %v904, %v915
  %v976 = vadd.f32 %v905, %v915
  %v977 = vadd.f32 %v906, %v915
  %v978 = vadd.f32 %v907, %v915
  %v979 = vadd.f32 %v908, %v915
  %v980 = vadd.f32 %v909, %v915
  %v981 = vmax.f32 %v917, 0.0
  %v982 = vmax.f32 %v918, 0.0
  %v983 = vmax.f32 %v919, 0.0
  %v984 = vmax.f32 %v920, 0.0
  %v985 = vmax.f32 %v921, 0.0
  %v986 = vmax.f32 %v922, 0.0
  %v987 = vmax.f32 %v923, 0.0
  %v988 = vmax.f32 %v924, 0.0
  %v989 = vmax.f32 %v925, 0.0
  %v990 = vmax.f32 %v926, 0.0
  %v991 = vmax.f32 %v927, 0.0
  %v992 = vmax.f32 %v928, 0.0
  %v993 = vmax.f32 %v929, 0.0
  %v994 = vmax.f32 %v930, 0.0
  %v995 = vmax.f32 %v931, 0.0
  %v996 = vmax.f32 %v932, 0.0
  %v997 = vmax.f32 %v933, 0.0
  %v998 = vmax.f32 %v934, 0.0
  %v999 = vmax.f32 %v935, 0.0
  %v1000 = vmax.f32 %v936, 0.0
  %v1001 = vmax.f32 %v937, 0.0
  %v1002 = vmax.f32 %v938, 0.0
  %v1003 = vmax.f32 %v939, 0.0
  %v1004 = vmax.f32 %v940, 0.0
  %v1005 = vmax.f32 %v941, 0.0
  %v1006 = vmax.f32 %v942, 0.0
  %v1007 = vmax.f32 %v943, 0.0
  %v1008 = vmax.f32 %v944, 0.0
  %v1009 = vmax.f32 %v945, 0.0
  %v1010 = vmax.f32 %v946, 0.0
  %v1011 = vmax.f32 %v947, 0.0
  %v1012 = vmax.f32 %v948, 0.0
  %v1013 = vmax.f32 %v949, 0.0
  %v1014 = vmax.f32 %v950, 0.0
  %v1015 = vmax.f32 %v951, 0.0
  %v1016 = vmax.f32 %v952, 0.0
  %v1017 = vmax.f32 %v953, 0.0
  %v1018 = vmax.f32 %v954, 0.0
  %v1019 = vmax.f32 %v955, 0.0
  %v1020 = vmax.f32 %v956, 0.0
  %v1021 = vmax.f32 %v957, 0.0
  %v1022 = vmax.f32 %v958, 0.0
  %v1023 = vmax.f32 %v959, 0.0
  %v1024 = vmax.f32 %v960, 0.0
  %v1025 = vmax.f32 %v961, 0.0
  %v1026 = vmax.f32 %v962, 0.0
  %v1027 = vmax.f32 %v963, 0.0
  %v1028 = vmax.f32 %v964, 0.0
  %v1029 = vmax.f32 %v965, 0.0
  %v1030 = vmax.f32 %v966, 0.0
  %v1031 = vmax.f32 %v967, 0.0
  %v1032 = vmax.f32 %v968, 0.0
  %v1033 = vmax.f32 %v969, 0.0
  %v1034 = vmax.f32 %v970, 0.0
  %v1035 = vmax.f32 %v971, 0.0
  %v1036 = vmax.f32 %v972, 0.0
  %v1037 = vmax.f32 %v973, 0.0
  %v1038 = vmax.f32 %v974, 0.0
  %v1039 = vmax.f32 %v975, 0.0
  %v1040 = vmax.f32 %v976, 0.0
  %v1041 = vmax.f32 %v977, 0.0
  %v1042 = vmax.f32 %v978, 0.0
  %v1043 = vmax.f32 %v979, 0.0
  %v1044 = vmax.f32 %v980, 0.0
  %v1045 = vpack.c.bf16 %v982, %v981
  %v1046 = vpack.c.bf16 %v984, %v983
  %v1047 = vpack.c.bf16 %v986, %v985
  %v1048 = vpack.c.bf16 %v988, %v987
  %v1049 = vpack.c.bf16 %v990, %v989
  %v1050 = vpack.c.bf16 %v992, %v991
  %v1051 = vpack.c.bf16 %v994, %v993
  %v1052 = vpack.c.bf16 %v996, %v995
  %v1053 = vpack.c.bf16 %v998, %v997
  %v1054 = vpack.c.bf16 %v1000, %v999
  %v1055 = vpack.c.bf16 %v1002, %v1001
  %v1056 = vpack.c.bf16 %v1004, %v1003
  %v1057 = vpack.c.bf16 %v1006, %v1005
  %v1058 = vpack.c.bf16 %v1008, %v1007
  %v1059 = vpack.c.bf16 %v1010, %v1009
  %v1060 = vpack.c.bf16 %v1012, %v1011
  %v1061 = vpack.c.bf16 %v1014, %v1013
  %v1062 = vpack.c.bf16 %v1016, %v1015
  %v1063 = vpack.c.bf16 %v1018, %v1017
  %v1064 = vpack.c.bf16 %v1020, %v1019
  %v1065 = vpack.c.bf16 %v1022, %v1021
  %v1066 = vpack.c.bf16 %v1024, %v1023
  %v1067 = vpack.c.bf16 %v1026, %v1025
  %v1068 = vpack.c.bf16 %v1028, %v1027
  %v1069 = vpack.c.bf16 %v1030, %v1029
  %v1070 = vpack.c.bf16 %v1032, %v1031
  %v1071 = vpack.c.bf16 %v1034, %v1033
  %v1072 = vpack.c.bf16 %v1036, %v1035
  %v1073 = vpack.c.bf16 %v1038, %v1037
  %v1074 = vpack.c.bf16 %v1040, %v1039
  %v1075 = vpack.c.bf16 %v1042, %v1041
  %v1076 = vpack.c.bf16 %v1044, %v1043
  %v1109 = vunpack.c.l.b16 %v1045
  %v1110 = vunpack.c.h.b16 %v1045
  %v1111 = vunpack.c.l.b16 %v1046
  %v1112 = vunpack.c.h.b16 %v1046
  %v1113 = vunpack.c.l.b16 %v1047
  %v1114 = vunpack.c.h.b16 %v1047
  %v1115 = vunpack.c.l.b16 %v1048
  %v1116 = vunpack.c.h.b16 %v1048
  %v1117 = vunpack.c.l.b16 %v1049
  %v1118 = vunpack.c.h.b16 %v1049
  %v1119 = vunpack.c.l.b16 %v1050
  %v1120 = vunpack.c.h.b16 %v1050
  %v1121 = vunpack.c.l.b16 %v1051
  %v1122 = vunpack.c.h.b16 %v1051
  %v1123 = vunpack.c.l.b16 %v1052
  %v1124 = vunpack.c.h.b16 %v1052
  %v1125 = vunpack.c.l.b16 %v1053
  %v1126 = vunpack.c.h.b16 %v1053
  %v1127 = vunpack.c.l.b16 %v1054
  %v1128 = vunpack.c.h.b16 %v1054
  %v1129 = vunpack.c.l.b16 %v1055
  %v1130 = vunpack.c.h.b16 %v1055
  %v1131 = vunpack.c.l.b16 %v1056
  %v1132 = vunpack.c.h.b16 %v1056
  %v1133 = vunpack.c.l.b16 %v1057
  %v1134 = vunpack.c.h.b16 %v1057
  %v1135 = vunpack.c.l.b16 %v1058
  %v1136 = vunpack.c.h.b16 %v1058
  %v1137 = vunpack.c.l.b16 %v1059
  %v1138 = vunpack.c.h.b16 %v1059
  %v1139 = vunpack.c.l.b16 %v1060
  %v1140 = vunpack.c.h.b16 %v1060
  %v1141 = vunpack.c.l.b16 %v1061
  %v1142 = vunpack.c.h.b16 %v1061
  %v1143 = vunpack.c.l.b16 %v1062
  %v1144 = vunpack.c.h.b16 %v1062
  %v1145 = vunpack.c.l.b16 %v1063
  %v1146 = vunpack.c.h.b16 %v1063
  %v1147 = vunpack.c.l.b16 %v1064
  %v1148 = vunpack.c.h.b16 %v1064
  %v1149 = vunpack.c.l.b16 %v1065
  %v1150 = vunpack.c.h.b16 %v1065
  %v1151 = vunpack.c.l.b16 %v1066
  %v1152 = vunpack.c.h.b16 %v1066
  %v1153 = vunpack.c.l.b16 %v1067
  %v1154 = vunpack.c.h.b16 %v1067
  %v1155 = vunpack.c.l.b16 %v1068
  %v1156 = vunpack.c.h.b16 %v1068
  %v1157 = vunpack.c.l.b16 %v1069
  %v1158 = vunpack.c.h.b16 %v1069
  %v1159 = vunpack.c.l.b16 %v1070
  %v1160 = vunpack.c.h.b16 %v1070
  %v1161 = vunpack.c.l.b16 %v1071
  %v1162 = vunpack.c.h.b16 %v1071
  %v1163 = vunpack.c.l.b16 %v1072
  %v1164 = vunpack.c.h.b16 %v1072
  %v1165 = vunpack.c.l.b16 %v1073
  %v1166 = vunpack.c.h.b16 %v1073
  %v1167 = vunpack.c.l.b16 %v1074
  %v1168 = vunpack.c.h.b16 %v1074
  %v1169 = vunpack.c.l.b16 %v1075
  %v1170 = vunpack.c.h.b16 %v1075
  %v1171 = vunpack.c.l.b16 %v1076
  %v1172 = vunpack.c.h.b16 %v1076
  %v1173 = vpack.c.b16 %v1109, %v1109
  %v1174 = vpack.c.b16 %v1110, %v1110
  %v1175 = vpack.c.b16 %v1111, %v1111
  %v1176 = vpack.c.b16 %v1112, %v1112
  %v1177 = vpack.c.b16 %v1113, %v1113
  %v1178 = vpack.c.b16 %v1114, %v1114
  %v1179 = vpack.c.b16 %v1115, %v1115
  %v1180 = vpack.c.b16 %v1116, %v1116
  %v1181 = vpack.c.b16 %v1117, %v1117
  %v1182 = vpack.c.b16 %v1118, %v1118
  %v1183 = vpack.c.b16 %v1119, %v1119
  %v1184 = vpack.c.b16 %v1120, %v1120
  %v1185 = vpack.c.b16 %v1121, %v1121
  %v1186 = vpack.c.b16 %v1122, %v1122
  %v1187 = vpack.c.b16 %v1123, %v1123
  %v1188 = vpack.c.b16 %v1124, %v1124
  %v1189 = vpack.c.b16 %v1125, %v1125
  %v1190 = vpack.c.b16 %v1126, %v1126
  %v1191 = vpack.c.b16 %v1127, %v1127
  %v1192 = vpack.c.b16 %v1128, %v1128
  %v1193 = vpack.c.b16 %v1129, %v1129
  %v1194 = vpack.c.b16 %v1130, %v1130
  %v1195 = vpack.c.b16 %v1131, %v1131
  %v1196 = vpack.c.b16 %v1132, %v1132
  %v1197 = vpack.c.b16 %v1133, %v1133
  %v1198 = vpack.c.b16 %v1134, %v1134
  %v1199 = vpack.c.b16 %v1135, %v1135
  %v1200 = vpack.c.b16 %v1136, %v1136
  %v1201 = vpack.c.b16 %v1137, %v1137
  %v1202 = vpack.c.b16 %v1138, %v1138
  %v1203 = vpack.c.b16 %v1139, %v1139
  %v1204 = vpack.c.b16 %v1140, %v1140
  %v1205 = vpack.c.b16 %v1141, %v1141
  %v1206 = vpack.c.b16 %v1142, %v1142
  %v1207 = vpack.c.b16 %v1143, %v1143
  %v1208 = vpack.c.b16 %v1144, %v1144
  %v1209 = vpack.c.b16 %v1145, %v1145
  %v1210 = vpack.c.b16 %v1146, %v1146
  %v1211 = vpack.c.b16 %v1147, %v1147
  %v1212 = vpack.c.b16 %v1148, %v1148
  %v1213 = vpack.c.b16 %v1149, %v1149
  %v1214 = vpack.c.b16 %v1150, %v1150
  %v1215 = vpack.c.b16 %v1151, %v1151
  %v1216 = vpack.c.b16 %v1152, %v1152
  %v1217 = vpack.c.b16 %v1153, %v1153
  %v1218 = vpack.c.b16 %v1154, %v1154
  %v1219 = vpack.c.b16 %v1155, %v1155
  %v1220 = vpack.c.b16 %v1156, %v1156
  %v1221 = vpack.c.b16 %v1157, %v1157
  %v1222 = vpack.c.b16 %v1158, %v1158
  %v1223 = vpack.c.b16 %v1159, %v1159
  %v1224 = vpack.c.b16 %v1160, %v1160
  %v1225 = vpack.c.b16 %v1161, %v1161
  %v1226 = vpack.c.b16 %v1162, %v1162
  %v1227 = vpack.c.b16 %v1163, %v1163
  %v1228 = vpack.c.b16 %v1164, %v1164
  %v1229 = vpack.c.b16 %v1165, %v1165
  %v1230 = vpack.c.b16 %v1166, %v1166
  %v1231 = vpack.c.b16 %v1167, %v1167
  %v1232 = vpack.c.b16 %v1168, %v1168
  %v1233 = vpack.c.b16 %v1169, %v1169
  %v1234 = vpack.c.b16 %v1170, %v1170
  %v1235 = vpack.c.b16 %v1171, %v1171
  %v1236 = vpack.c.b16 %v1172, %v1172
  %vm1301 = vcmask 519168
  %1302 = vst.msk [vmem:[%s4] sm:$0xf] %vm1301, %v1173
  %1303 = vst.msk [vmem:[%s4 + $0x4] sm:$0xf] %vm1301, %v1174
  %1304 = vst.msk [vmem:[%s4 + $0x8] sm:$0xf] %vm1301, %v1175
  %1305 = vst.msk [vmem:[%s4 + $0xc] sm:$0xf] %vm1301, %v1176
  %1306 = vst.msk [vmem:[%s4 + $0x10] sm:$0xf] %vm1301, %v1177
  %1307 = vst.msk [vmem:[%s4 + $0x14] sm:$0xf] %vm1301, %v1178
  %1308 = vst.msk [vmem:[%s4 + $0x18] sm:$0xf] %vm1301, %v1179
  %1309 = vst.msk [vmem:[%s4 + $0x1c] sm:$0xf] %vm1301, %v1180
  %1310 = vst.msk [vmem:[%s4 + $0x20] sm:$0xf] %vm1301, %v1181
  %1311 = vst.msk [vmem:[%s4 + $0x24] sm:$0xf] %vm1301, %v1182
  %1312 = vst.msk [vmem:[%s4 + $0x28] sm:$0xf] %vm1301, %v1183
  %1313 = vst.msk [vmem:[%s4 + $0x2c] sm:$0xf] %vm1301, %v1184
  %1314 = vst.msk [vmem:[%s4 + $0x30] sm:$0xf] %vm1301, %v1185
  %1315 = vst.msk [vmem:[%s4 + $0x34] sm:$0xf] %vm1301, %v1186
  %1316 = vst.msk [vmem:[%s4 + $0x38] sm:$0xf] %vm1301, %v1187
  %1317 = vst.msk [vmem:[%s4 + $0x3c] sm:$0xf] %vm1301, %v1188
  %1318 = vst.msk [vmem:[%s4 + $0x40] sm:$0xf] %vm1301, %v1189
  %1319 = vst.msk [vmem:[%s4 + $0x44] sm:$0xf] %vm1301, %v1190
  %1320 = vst.msk [vmem:[%s4 + $0x48] sm:$0xf] %vm1301, %v1191
  %1321 = vst.msk [vmem:[%s4 + $0x4c] sm:$0xf] %vm1301, %v1192
  %1322 = vst.msk [vmem:[%s4 + $0x50] sm:$0xf] %vm1301, %v1193
  %1323 = vst.msk [vmem:[%s4 + $0x54] sm:$0xf] %vm1301, %v1194
  %1324 = vst.msk [vmem:[%s4 + $0x58] sm:$0xf] %vm1301, %v1195
  %1325 = vst.msk [vmem:[%s4 + $0x5c] sm:$0xf] %vm1301, %v1196
  %1326 = vst.msk [vmem:[%s4 + $0x60] sm:$0xf] %vm1301, %v1197
  %1327 = vst.msk [vmem:[%s4 + $0x64] sm:$0xf] %vm1301, %v1198
  %1328 = vst.msk [vmem:[%s4 + $0x68] sm:$0xf] %vm1301, %v1199
  %1329 = vst.msk [vmem:[%s4 + $0x6c] sm:$0xf] %vm1301, %v1200
  %1330 = vst.msk [vmem:[%s4 + $0x70] sm:$0xf] %vm1301, %v1201
  %1331 = vst.msk [vmem:[%s4 + $0x74] sm:$0xf] %vm1301, %v1202
  %1332 = vst.msk [vmem:[%s4 + $0x78] sm:$0xf] %vm1301, %v1203
  %1333 = vst.msk [vmem:[%s4 + $0x7c] sm:$0xf] %vm1301, %v1204
  %1334 = vst.msk [vmem:[%s4 + $0x80] sm:$0xf] %vm1301, %v1205
  %1335 = vst.msk [vmem:[%s4 + $0x84] sm:$0xf] %vm1301, %v1206
  %1336 = vst.msk [vmem:[%s4 + $0x88] sm:$0xf] %vm1301, %v1207
  %1337 = vst.msk [vmem:[%s4 + $0x8c] sm:$0xf] %vm1301, %v1208
  %1338 = vst.msk [vmem:[%s4 + $0x90] sm:$0xf] %vm1301, %v1209
  %1339 = vst.msk [vmem:[%s4 + $0x94] sm:$0xf] %vm1301, %v1210
  %1340 = vst.msk [vmem:[%s4 + $0x98] sm:$0xf] %vm1301, %v1211
  %1341 = vst.msk [vmem:[%s4 + $0x9c] sm:$0xf] %vm1301, %v1212
  %1342 = vst.msk [vmem:[%s4 + $0xa0] sm:$0xf] %vm1301, %v1213
  %1343 = vst.msk [vmem:[%s4 + $0xa4] sm:$0xf] %vm1301, %v1214
  %1344 = vst.msk [vmem:[%s4 + $0xa8] sm:$0xf] %vm1301, %v1215
  %1345 = vst.msk [vmem:[%s4 + $0xac] sm:$0xf] %vm1301, %v1216
  %1346 = vst.msk [vmem:[%s4 + $0xb0] sm:$0xf] %vm1301, %v1217
  %1347 = vst.msk [vmem:[%s4 + $0xb4] sm:$0xf] %vm1301, %v1218
  %1348 = vst.msk [vmem:[%s4 + $0xb8] sm:$0xf] %vm1301, %v1219
  %1349 = vst.msk [vmem:[%s4 + $0xbc] sm:$0xf] %vm1301, %v1220
  %1350 = vst.msk [vmem:[%s4 + $0xc0] sm:$0xf] %vm1301, %v1221
  %1351 = vst.msk [vmem:[%s4 + $0xc4] sm:$0xf] %vm1301, %v1222
  %1352 = vst.msk [vmem:[%s4 + $0xc8] sm:$0xf] %vm1301, %v1223
  %1353 = vst.msk [vmem:[%s4 + $0xcc] sm:$0xf] %vm1301, %v1224
  %1354 = vst.msk [vmem:[%s4 + $0xd0] sm:$0xf] %vm1301, %v1225
  %1355 = vst.msk [vmem:[%s4 + $0xd4] sm:$0xf] %vm1301, %v1226
  %1356 = vst.msk [vmem:[%s4 + $0xd8] sm:$0xf] %vm1301, %v1227
  %1357 = vst.msk [vmem:[%s4 + $0xdc] sm:$0xf] %vm1301, %v1228
  %1358 = vst.msk [vmem:[%s4 + $0xe0] sm:$0xf] %vm1301, %v1229
  %1359 = vst.msk [vmem:[%s4 + $0xe4] sm:$0xf] %vm1301, %v1230
  %1360 = vst.msk [vmem:[%s4 + $0xe8] sm:$0xf] %vm1301, %v1231
  %1361 = vst.msk [vmem:[%s4 + $0xec] sm:$0xf] %vm1301, %v1232
  %1362 = vst.msk [vmem:[%s4 + $0xf0] sm:$0xf] %vm1301, %v1233
  %1363 = vst.msk [vmem:[%s4 + $0xf4] sm:$0xf] %vm1301, %v1234
  %1364 = vst.msk [vmem:[%s4 + $0xf8] sm:$0xf] %vm1301, %v1235
  %1365 = vst.msk [vmem:[%s4 + $0xfc] sm:$0xf] %vm1301, %v1236
  // Predicated region
  $region18: #{stem.3} parent=0 // pred_check
    _
  $region19: #{stem.3} parent=0 // pred_check_branch
    %1367 = sbr.rel (0) target = $region21
  $region20: #{stem.3} parent=0 // pred_region
    _
  $region21: #{stem.3} parent=0 // pred_fallthru
    _
  // Predicated region
  $region22: #{stem.3} parent=0 // pred_check
    _
  $region23: #{stem.3} parent=0 // pred_check_branch
    %1369 = sbr.rel (0) target = $region25
  $region24: #{stem.3} parent=0 // pred_region
    _
  $region25: #{stem.3} parent=0 // pred_fallthru
    _

</llo_original>
